<compile_context>
chip_gen: v6e
topology: v6e:2x2x1
jax: 0.10.0
libtpu: 0.0.40
codegen_flags: <defaults>
</compile_context>

<pallas_src>
import functools

import jax
import jax.numpy as jnp
import numpy as np
from jax import lax
from jax.experimental import pallas as pl
from jax.experimental.pallas import tpu as pltpu


def _conv_stats_kernel(p_ref, w_ref, sum_ref, ssq_ref):
    """Per-row-tile conv (bf16 MXU, f32 acc) + per-batch-element BN partial stats.

    p_ref   : (1, Lt, 9*Cin)  bf16 im2col patches for one row tile of one batch element
    w_ref   : (9*Cin, Cout)   bf16 reshaped conv weights
    sum_ref : (1, 1, Cout)    f32 partial per-channel sum   (accumulated over row tiles)
    ssq_ref : (1, 1, Cout)    f32 partial per-channel sum of squares
    """
    li = pl.program_id(1)

    @pl.when(li == 0)
    def _():
        sum_ref[...] = jnp.zeros_like(sum_ref)
        ssq_ref[...] = jnp.zeros_like(ssq_ref)

    y = jnp.dot(p_ref[0], w_ref[...], preferred_element_type=jnp.float32)  # (Lt, Cout)
    sum_ref[0] = sum_ref[0] + jnp.sum(y, axis=0, keepdims=True)
    ssq_ref[0] = ssq_ref[0] + jnp.sum(y * y, axis=0, keepdims=True)


def _conv_bn_prelu_kernel(p_ref, w_ref, scale_ref, shift_ref, alpha_ref, o_ref):
    """Recompute conv tile + fused BatchNorm affine + PReLU, lane-dense output.

    p_ref    : (1, Lt, 9*Cin) bf16
    w_ref    : (9*Cin, Cout)  bf16
    scale_ref, shift_ref, alpha_ref : (1, Cout) f32
    o_ref    : (1, Lt, Cout)  f32   (channels-last, Cout=256 -> unmasked 128-lane stores)
    """
    y = jnp.dot(p_ref[0], w_ref[...], preferred_element_type=jnp.float32)  # (Lt, Cout)
    v = y * scale_ref[...] + shift_ref[...]
    o_ref[0] = jnp.where(v >= 0.0, v, alpha_ref[...] * v)


def _pick_row_tile(H, W):
    """Largest Ht dividing H with Ht*W <= 512 rows and (Ht*W) % 8 == 0; else full H*W."""
    for ht in range(H, 0, -1):
        if H % ht == 0 and ht * W <= 512 and (ht * W) % 8 == 0:
            return ht * W
    return H * W


def upsample_block_forward(x_nchw, w_oihw, b, gamma, beta, alpha, eps=1e-5):
    N, Cin, H, W = x_nchw.shape
    Cout = w_oihw.shape[0]
    r = 2
    K9 = 9 * Cin
    HW = H * W

    Lt = _pick_row_tile(H, W)
    n_l = HW // Lt

    # ---- XLA glue on tiny tensors: layout + im2col (input is 36/256 the size of the output) ----
    x_nhwc = jnp.transpose(x_nchw, (0, 2, 3, 1)).astype(jnp.float32)
    xp = jnp.pad(x_nhwc, ((0, 0), (1, 1), (1, 1), (0, 0)))
    patches = [xp[:, dh:dh + H, dw:dw + W, :] for dh in range(3) for dw in range(3)]
    P = jnp.concatenate(patches, axis=-1).reshape(N, HW, K9).astype(jnp.bfloat16)
    W9 = jnp.transpose(w_oihw, (2, 3, 1, 0)).reshape(K9, Cout).astype(jnp.bfloat16)
    # Conv bias `b` is intentionally dropped: training-mode BN mean-subtraction cancels
    # a constant per-channel bias exactly, so the forward output is unchanged.
    del b

    flops_conv = 2 * N * HW * K9 * Cout
    bytes_in = P.size * 2 + K9 * Cout * 2

    # ---- kernel 1: conv (not stored) + per-batch-element BN partial statistics ----
    ch_sum, ch_ssq = pl.pallas_call(
        _conv_stats_kernel,
        grid=(N, n_l),
        in_specs=[
            pl.BlockSpec((1, Lt, K9), lambda n, l: (n, l, 0)),
            pl.BlockSpec((K9, Cout), lambda n, l: (0, 0)),
        ],
        out_specs=(
            pl.BlockSpec((1, 1, Cout), lambda n, l: (n, 0, 0)),
            pl.BlockSpec((1, 1, Cout), lambda n, l: (n, 0, 0)),
        ),
        out_shape=(
            jax.ShapeDtypeStruct((N, 1, Cout), jnp.float32),
            jax.ShapeDtypeStruct((N, 1, Cout), jnp.float32),
        ),
        compiler_params=pltpu.CompilerParams(
            dimension_semantics=("parallel", "arbitrary")),
        cost_estimate=pl.CostEstimate(
            flops=flops_conv, transcendentals=0,
            bytes_accessed=bytes_in + 2 * N * Cout * 4),
    )(P, W9)

    # ---- tiny glue: batch stats -> BN scale/shift (training-mode, biased variance) ----
    cnt = jnp.float32(N * HW)
    mean = jnp.sum(ch_sum, axis=0) / cnt                      # (1, Cout)
    var = jnp.sum(ch_ssq, axis=0) / cnt - mean * mean         # biased var (PyTorch training BN)
    scale = (gamma.reshape(1, Cout) / jnp.sqrt(var + eps)).astype(jnp.float32)
    shift = (beta.reshape(1, Cout) - mean * scale).astype(jnp.float32)
    alpha_v = jnp.full((1, Cout), alpha, jnp.float32)

    # ---- kernel 2: recompute conv + fused BN affine + PReLU (lane-dense 256-ch output) ----
    z = pl.pallas_call(
        _conv_bn_prelu_kernel,
        grid=(N, n_l),
        in_specs=[
            pl.BlockSpec((1, Lt, K9), lambda n, l: (n, l, 0)),
            pl.BlockSpec((K9, Cout), lambda n, l: (0, 0)),
            pl.BlockSpec((1, Cout), lambda n, l: (0, 0)),
            pl.BlockSpec((1, Cout), lambda n, l: (0, 0)),
            pl.BlockSpec((1, Cout), lambda n, l: (0, 0)),
        ],
        out_specs=pl.BlockSpec((1, Lt, Cout), lambda n, l: (n, l, 0)),
        out_shape=jax.ShapeDtypeStruct((N, HW, Cout), jnp.float32),
        compiler_params=pltpu.CompilerParams(
            dimension_semantics=("parallel", "parallel")),
        cost_estimate=pl.CostEstimate(
            flops=flops_conv + 4 * N * HW * Cout, transcendentals=0,
            bytes_accessed=bytes_in + 3 * Cout * 4 + N * HW * Cout * 4),
    )(P, W9, scale, shift, alpha_v)

    # ---- PixelShuffle(2) + NCHW: a single fused XLA transpose over the output-sized tensor ----
    # z channel index = c*4 + i*2 + j ; out[n, c, 2h+i, 2w+j]
    Cps = Cout // (r * r)
    out = (z.reshape(N, H, W, Cps, r, r)
             .transpose(0, 3, 1, 4, 2, 5)
             .reshape(N, Cps, H * r, W * r))
    return out


def _reference(x, w_oihw, b, gamma, beta, alpha, eps=1e-5):
    """Pure-JAX reference reproducing the PyTorch forward.

    Conv inputs are cast to bf16 with f32 accumulation to mirror the kernel's MXU
    input quantization (standard TPU practice); all other math is f32.
    """
    N, Cin, H, W = x.shape
    Cout = w_oihw.shape[0]
    r = 2
    y = lax.conv_general_dilated(
        x.astype(jnp.bfloat16), w_oihw.astype(jnp.bfloat16), (1, 1), "SAME",
        dimension_numbers=("NCHW", "OIHW", "NCHW"),
        preferred_element_type=jnp.float32,
    ) + b[None, :, None, None]
    mean = y.mean((0, 2, 3), keepdims=True)
    var = y.var((0, 2, 3), keepdims=True)          # biased, like PyTorch training BN
    ybn = (y - mean) / jnp.sqrt(var + eps) * gamma[None, :, None, None] \
        + beta[None, :, None, None]
    Cps = Cout // (r * r)
    ps = (ybn.reshape(N, Cps, r, r, H, W)
             .transpose(0, 1, 4, 2, 5, 3)
             .reshape(N, Cps, H * r, W * r))
    return jnp.where(ps >= 0, ps, alpha * ps)


if __name__ == "__main__":
    key = jax.random.PRNGKey(0)
    N, Cin, H, W = 2, 4, 16, 16
    Cout = 256

    k1, k2, k3 = jax.random.split(key, 3)
    x = jax.random.normal(k1, (N, Cin, H, W), jnp.float32)
    # shapes follow nn.Conv2d(Cin, 256, 3, padding=1) / BatchNorm2d(256) / PReLU()
    w_oihw = jax.random.normal(k2, (Cout, Cin, 3, 3), jnp.float32) * 0.05
    b = jax.random.normal(k3, (Cout,), jnp.float32) * 0.05
    gamma = jnp.ones((Cout,), jnp.float32)     # BatchNorm2d default init
    beta = jnp.zeros((Cout,), jnp.float32)
    alpha = 0.25                               # nn.PReLU() default (single shared alpha)
    eps = 1e-5

    fwd = jax.jit(functools.partial(upsample_block_forward, eps=eps))
    out = fwd(x, w_oihw, b, gamma, beta, alpha)
    out = jax.block_until_ready(out)

    ref = _reference(x, w_oihw, b, gamma, beta, alpha, eps)
    assert out.shape == (N, Cout // 4, H * 2, W * 2), out.shape
    np.testing.assert_allclose(np.asarray(out), np.asarray(ref), rtol=2e-3, atol=2e-3)

    print("KERNEL_OK")
</pallas_src>

<mosaic_0001>
module attributes {stable_mosaic.version = 11 : i64} {
  func.func @_conv_stats_kernel(%arg0: i32, %arg1: i32, %arg2: memref<1x256x36xbf16, #tpu.memory_space<vmem>>, %arg3: memref<36x256xbf16, #tpu.memory_space<vmem>>, %arg4: memref<1x1x256xf32, #tpu.memory_space<vmem>>, %arg5: memref<1x1x256xf32, #tpu.memory_space<vmem>>) attributes {dimension_semantics = [#tpu.dimension_semantics<parallel>, #tpu.dimension_semantics<arbitrary>], iteration_bounds = array<i64: 2, 1>, scalar_prefetch = 0 : i64, scratch_operands = 0 : i64, tpu.core_type = #tpu.core_type<tc>, window_params = [{transform_indices = @transform_0, window_bounds = array<i64: 1, 256, 36>}, {pipeline_mode = #tpu.pipeline_mode<synchronous>, transform_indices = @transform_1, window_bounds = array<i64: 36, 256>}, {transform_indices = @transform_2, window_bounds = array<i64: 1, 1, 256>}, {transform_indices = @transform_3, window_bounds = array<i64: 1, 1, 256>}]} {
    %c0_i32 = arith.constant 0 : i32
    %0 = arith.cmpi eq, %arg1, %c0_i32 : i32
    %1 = arith.extui %0 : i1 to i32
    %c0_i32_0 = arith.constant 0 : i32
    %2 = arith.cmpi ne, %1, %c0_i32_0 : i32
    scf.if %2 {
      %cst_19 = arith.constant 0.000000e+00 : f32
      %24 = vector.broadcast %cst_19 : f32 to vector<1x1x256xf32>
      %c0_20 = arith.constant 0 : index
      %c0_21 = arith.constant 0 : index
      %c0_22 = arith.constant 0 : index
      %25 = vector.load %arg4[%c0_20, %c0_21, %c0_22] : memref<1x1x256xf32, #tpu.memory_space<vmem>>, vector<1x1x256xf32>
      tpu.vector_store %arg4[%c0_20, %c0_21, %c0_22], %24 {strides = array<i32>} : memref<1x1x256xf32, #tpu.memory_space<vmem>>, vector<1x1x256xf32>,
      %cst_23 = arith.constant 0.000000e+00 : f32
      %26 = vector.broadcast %cst_23 : f32 to vector<1x1x256xf32>
      %c0_24 = arith.constant 0 : index
      %c0_25 = arith.constant 0 : index
      %c0_26 = arith.constant 0 : index
      %27 = vector.load %arg5[%c0_24, %c0_25, %c0_26] : memref<1x1x256xf32, #tpu.memory_space<vmem>>, vector<1x1x256xf32>
      tpu.vector_store %arg5[%c0_24, %c0_25, %c0_26], %26 {strides = array<i32>} : memref<1x1x256xf32, #tpu.memory_space<vmem>>, vector<1x1x256xf32>,
    } else {
    }
    %c0 = arith.constant 0 : index
    %c0_1 = arith.constant 0 : index
    %c0_2 = arith.constant 0 : index
    %3 = vector.load %arg2[%c0, %c0_1, %c0_2] : memref<1x256x36xbf16, #tpu.memory_space<vmem>>, vector<1x256x36xbf16>
    %4 = vector.shape_cast %3 : vector<1x256x36xbf16> to vector<256x36xbf16>
    %c0_3 = arith.constant 0 : index
    %c0_4 = arith.constant 0 : index
    %5 = vector.load %arg3[%c0_3, %c0_4] : memref<36x256xbf16, #tpu.memory_space<vmem>>, vector<36x256xbf16>
    %cst = arith.constant dense<0.000000e+00> : vector<256x256xf32>
    %6 = tpu.matmul %4, %5, %cst {dimension_numbers = #tpu.dot_dimension_numbers<[1], [0], [0], [1], [0, 0, 1, 1], [], []>} : vector<256x36xbf16>, vector<36x256xbf16>, vector<256x256xf32> -> vector<256x256xf32>
    %c0_5 = arith.constant 0 : index
    %c0_6 = arith.constant 0 : index
    %c0_7 = arith.constant 0 : index
    %7 = vector.load %arg4[%c0_5, %c0_6, %c0_7] : memref<1x1x256xf32, #tpu.memory_space<vmem>>, vector<1x1x256xf32>
    %8 = vector.shape_cast %7 : vector<1x1x256xf32> to vector<1x256xf32>
    %cst_8 = arith.constant dense<0.000000e+00> : vector<256xf32>
    %9 = vector.multi_reduction <add>, %6, %cst_8 [0] : vector<256x256xf32> to vector<256xf32>
    %10 = vector.shape_cast %9 : vector<256xf32> to vector<1x256xf32>
    %11 = arith.addf %8, %10 : vector<1x256xf32>
    %c0_9 = arith.constant 0 : index
    %c0_10 = arith.constant 0 : index
    %c0_11 = arith.constant 0 : index
    %12 = vector.load %arg4[%c0_9, %c0_10, %c0_11] : memref<1x1x256xf32, #tpu.memory_space<vmem>>, vector<1x1x256xf32>
    %13 = vector.shape_cast %12 : vector<1x1x256xf32> to vector<1x256xf32>
    %14 = vector.shape_cast %11 : vector<1x256xf32> to vector<1x1x256xf32>
    tpu.vector_store %arg4[%c0_9, %c0_10, %c0_11], %14 {strides = array<i32>} : memref<1x1x256xf32, #tpu.memory_space<vmem>>, vector<1x1x256xf32>,
    %c0_12 = arith.constant 0 : index
    %c0_13 = arith.constant 0 : index
    %c0_14 = arith.constant 0 : index
    %15 = vector.load %arg5[%c0_12, %c0_13, %c0_14] : memref<1x1x256xf32, #tpu.memory_space<vmem>>, vector<1x1x256xf32>
    %16 = vector.shape_cast %15 : vector<1x1x256xf32> to vector<1x256xf32>
    %17 = arith.mulf %6, %6 : vector<256x256xf32>
    %cst_15 = arith.constant dense<0.000000e+00> : vector<256xf32>
    %18 = vector.multi_reduction <add>, %17, %cst_15 [0] : vector<256x256xf32> to vector<256xf32>
    %19 = vector.shape_cast %18 : vector<256xf32> to vector<1x256xf32>
    %20 = arith.addf %16, %19 : vector<1x256xf32>
    %c0_16 = arith.constant 0 : index
    %c0_17 = arith.constant 0 : index
    %c0_18 = arith.constant 0 : index
    %21 = vector.load %arg5[%c0_16, %c0_17, %c0_18] : memref<1x1x256xf32, #tpu.memory_space<vmem>>, vector<1x1x256xf32>
    %22 = vector.shape_cast %21 : vector<1x1x256xf32> to vector<1x256xf32>
    %23 = vector.shape_cast %20 : vector<1x256xf32> to vector<1x1x256xf32>
    tpu.vector_store %arg5[%c0_16, %c0_17, %c0_18], %23 {strides = array<i32>} : memref<1x1x256xf32, #tpu.memory_space<vmem>>, vector<1x1x256xf32>,
    return
  }
  func.func @transform_0(%arg0: i32, %arg1: i32) -> (i32, i32, i32) {
    %c0_i32 = arith.constant 0 : i32
    %c0_i32_0 = arith.constant 0 : i32
    return %arg0, %arg1, %c0_i32 : i32, i32, i32
  }
  func.func @transform_1(%arg0: i32, %arg1: i32) -> (i32, i32) {
    %c0_i32 = arith.constant 0 : i32
    %c0_i32_0 = arith.constant 0 : i32
    %c0_i32_1 = arith.constant 0 : i32
    return %c0_i32, %c0_i32_0 : i32, i32
  }
  func.func @transform_2(%arg0: i32, %arg1: i32) -> (i32, i32, i32) {
    %c0_i32 = arith.constant 0 : i32
    %c0_i32_0 = arith.constant 0 : i32
    %c0_i32_1 = arith.constant 0 : i32
    return %arg0, %c0_i32, %c0_i32_0 : i32, i32, i32
  }
  func.func @transform_3(%arg0: i32, %arg1: i32) -> (i32, i32, i32) {
    %c0_i32 = arith.constant 0 : i32
    %c0_i32_0 = arith.constant 0 : i32
    %c0_i32_1 = arith.constant 0 : i32
    return %arg0, %c0_i32, %c0_i32_0 : i32, i32, i32
  }
}

module attributes {stable_mosaic.version = 11 : i64} {
  func.func @_conv_bn_prelu_kernel(%arg0: i32, %arg1: i32, %arg2: memref<1x256x36xbf16, #tpu.memory_space<vmem>>, %arg3: memref<36x256xbf16, #tpu.memory_space<vmem>>, %arg4: memref<1x256xf32, #tpu.memory_space<vmem>>, %arg5: memref<1x256xf32, #tpu.memory_space<vmem>>, %arg6: memref<1x256xf32, #tpu.memory_space<vmem>>, %arg7: memref<1x256x256xf32, #tpu.memory_space<vmem>>) attributes {dimension_semantics = [#tpu.dimension_semantics<parallel>, #tpu.dimension_semantics<parallel>], iteration_bounds = array<i64: 2, 1>, scalar_prefetch = 0 : i64, scratch_operands = 0 : i64, tpu.core_type = #tpu.core_type<tc>, window_params = [{transform_indices = @transform_0, window_bounds = array<i64: 1, 256, 36>}, {pipeline_mode = #tpu.pipeline_mode<synchronous>, transform_indices = @transform_1, window_bounds = array<i64: 36, 256>}, {pipeline_mode = #tpu.pipeline_mode<synchronous>, transform_indices = @transform_2, window_bounds = array<i64: 1, 256>}, {pipeline_mode = #tpu.pipeline_mode<synchronous>, transform_indices = @transform_3, window_bounds = array<i64: 1, 256>}, {pipeline_mode = #tpu.pipeline_mode<synchronous>, transform_indices = @transform_4, window_bounds = array<i64: 1, 256>}, {transform_indices = @transform_5, window_bounds = array<i64: 1, 256, 256>}]} {
    %c0 = arith.constant 0 : index
    %c0_0 = arith.constant 0 : index
    %c0_1 = arith.constant 0 : index
    %0 = vector.load %arg2[%c0, %c0_0, %c0_1] : memref<1x256x36xbf16, #tpu.memory_space<vmem>>, vector<1x256x36xbf16>
    %1 = vector.shape_cast %0 : vector<1x256x36xbf16> to vector<256x36xbf16>
    %c0_2 = arith.constant 0 : index
    %c0_3 = arith.constant 0 : index
    %2 = vector.load %arg3[%c0_2, %c0_3] : memref<36x256xbf16, #tpu.memory_space<vmem>>, vector<36x256xbf16>
    %cst = arith.constant dense<0.000000e+00> : vector<256x256xf32>
    %3 = tpu.matmul %1, %2, %cst {dimension_numbers = #tpu.dot_dimension_numbers<[1], [0], [0], [1], [0, 0, 1, 1], [], []>} : vector<256x36xbf16>, vector<36x256xbf16>, vector<256x256xf32> -> vector<256x256xf32>
    %c0_4 = arith.constant 0 : index
    %c0_5 = arith.constant 0 : index
    %4 = vector.load %arg4[%c0_4, %c0_5] : memref<1x256xf32, #tpu.memory_space<vmem>>, vector<1x256xf32>
    %5 = vector.broadcast %4 : vector<1x256xf32> to vector<256x256xf32>
    %6 = arith.mulf %3, %5 : vector<256x256xf32>
    %c0_6 = arith.constant 0 : index
    %c0_7 = arith.constant 0 : index
    %7 = vector.load %arg5[%c0_6, %c0_7] : memref<1x256xf32, #tpu.memory_space<vmem>>, vector<1x256xf32>
    %8 = vector.broadcast %7 : vector<1x256xf32> to vector<256x256xf32>
    %9 = arith.addf %6, %8 : vector<256x256xf32>
    %cst_8 = arith.constant 0.000000e+00 : f32
    %10 = vector.broadcast %cst_8 : f32 to vector<256x256xf32>
    %11 = arith.cmpf oge, %9, %10 : vector<256x256xf32>
    %c0_9 = arith.constant 0 : index
    %c0_10 = arith.constant 0 : index
    %12 = vector.load %arg6[%c0_9, %c0_10] : memref<1x256xf32, #tpu.memory_space<vmem>>, vector<1x256xf32>
    %13 = vector.broadcast %12 : vector<1x256xf32> to vector<256x256xf32>
    %14 = arith.mulf %13, %9 : vector<256x256xf32>
    %15 = arith.select %11, %9, %14 : vector<256x256xi1>, vector<256x256xf32>
    %c0_11 = arith.constant 0 : index
    %c0_12 = arith.constant 0 : index
    %c0_13 = arith.constant 0 : index
    %16 = vector.load %arg7[%c0_11, %c0_12, %c0_13] : memref<1x256x256xf32, #tpu.memory_space<vmem>>, vector<1x256x256xf32>
    %17 = vector.shape_cast %16 : vector<1x256x256xf32> to vector<256x256xf32>
    %18 = vector.shape_cast %15 : vector<256x256xf32> to vector<1x256x256xf32>
    tpu.vector_store %arg7[%c0_11, %c0_12, %c0_13], %18 {strides = array<i32>} : memref<1x256x256xf32, #tpu.memory_space<vmem>>, vector<1x256x256xf32>,
    return
  }
  func.func @transform_0(%arg0: i32, %arg1: i32) -> (i32, i32, i32) {
    %c0_i32 = arith.constant 0 : i32
    %c0_i32_0 = arith.constant 0 : i32
    return %arg0, %arg1, %c0_i32 : i32, i32, i32
  }
  func.func @transform_1(%arg0: i32, %arg1: i32) -> (i32, i32) {
    %c0_i32 = arith.constant 0 : i32
    %c0_i32_0 = arith.constant 0 : i32
    %c0_i32_1 = arith.constant 0 : i32
    return %c0_i32, %c0_i32_0 : i32, i32
  }
  func.func @transform_2(%arg0: i32, %arg1: i32) -> (i32, i32) {
    %c0_i32 = arith.constant 0 : i32
    %c0_i32_0 = arith.constant 0 : i32
    %c0_i32_1 = arith.constant 0 : i32
    return %c0_i32, %c0_i32_0 : i32, i32
  }
  func.func @transform_3(%arg0: i32, %arg1: i32) -> (i32, i32) {
    %c0_i32 = arith.constant 0 : i32
    %c0_i32_0 = arith.constant 0 : i32
    %c0_i32_1 = arith.constant 0 : i32
    return %c0_i32, %c0_i32_0 : i32, i32
  }
  func.func @transform_4(%arg0: i32, %arg1: i32) -> (i32, i32) {
    %c0_i32 = arith.constant 0 : i32
    %c0_i32_0 = arith.constant 0 : i32
    %c0_i32_1 = arith.constant 0 : i32
    return %c0_i32, %c0_i32_0 : i32, i32
  }
  func.func @transform_5(%arg0: i32, %arg1: i32) -> (i32, i32, i32) {
    %c0_i32 = arith.constant 0 : i32
    %c0_i32_0 = arith.constant 0 : i32
    return %arg0, %arg1, %c0_i32 : i32, i32, i32
  }
}

</mosaic_0001>

<llo_original>
// kernel: upsample_block_forward.2
$region0: #{upsample_block_forward.2}
  #allocation0 [shape = 'u32[]', space=smem, size = 0x4, offset = 0x4, fixed_abs, tag = 'smem constant byte address 0x4 - core index']
  #allocation1 [shape = 'u32[144,128]{1,0:T(1,128)}', space=vmem, size = 0x12000, scoped, tag = 'internal scratch']
  %s0 = inlined_call_operand.vmem [shape: bf16[2,256,36], index: 0, kind: input, shape index: {}]
  %s1 = inlined_call_operand.vmem [shape: bf16[36,256], index: 1, kind: input, shape index: {}]
  %s2 = inlined_call_operand.vmem [shape: f32[2,1,256], index: 2, kind: output, shape index: {0}]
  %s3 = inlined_call_operand.vmem [shape: f32[2,1,256], index: 3, kind: output, shape index: {1}]
  %4 = xla_tuple %s2, %s3
  %s5 = sld [smem:[#allocation0]]
  $region53: #{upsample_block_forward.2} parent=0
    _
  %s7 = ssub.s32 1, %s5
  %s8 = scalar_select 0, %s7, %s5
  loop: start=0, step=1, limit=4
  $region2: #{upsample_block_forward.2} parent=0 // loop_pre_header
    _
  $region3: #{upsample_block_forward.2} parent=0 // loop_header
    %s10 = sphi 0, %s14
    %p11 = scmp.ge.s32.totalorder %s10, 4
    %s17 = sphi 0, %s29
    %s18 = sphi 0, %s25
    %s19 = sphi 0, %s17
    %s20 = sphi 0, %s18
    %s21 = sphi 0, %s19
    %s22 = sphi 0, %s20
    %s34 = sphi 0, %s36
    %s37 = sphi 0, %s34
    %s38 = sphi 0, %s37
    %s54 = sphi 0, %s38
    %s58 = sphi 0, %s58
    %s60 = sphi 0, %s58
    %s61 = sphi 0, %s60
    %s75 = sphi 0, %s61
    %s81 = sphi 0, %s83
    %s84 = sphi 0, %s81
    %s85 = sphi 0, %s84
    %s101 = sphi 0, %s85
    %s107 = sphi 0, %s109
    %s110 = sphi 0, %s107
    %s111 = sphi 0, %s110
    %s127 = sphi 0, %s111
  $region4: #{upsample_block_forward.2} parent=0 // loop_header_branch
    %13 = sbr.rel (%p11) target = $region8
  $region5: #{upsample_block_forward.2} parent=0 // loop_body
    %s15 = ssub.s32 %s10, 1
    %s16 = ssub.s32 %s10, 2
    %s23 = sadd.s32 1, %s18
    %p24 = scmp.ge.s32.totalorder %s23, 1
    %s25 = scalar_select %p24, 0, %s23
    %s26 = sadd.s32 1, %s17
    %s27 = scalar_select %p24, %s26, %s17
    %p28 = scmp.ge.s32.totalorder %s27, 2
    %s29 = scalar_select %p28, 0, %s27
    %s30 = ssub.s32 %s17, %s29
    %s31 = ssub.s32 %s18, %s25
    %s32 = sor.u32 %s30, %s31
    %p33 = scmp.eq.s32.totalorder %s32, 0
    %s35 = sadd.s32 %s34, 1
    %s36 = scalar_select %p33, %s34, %s35
    %p39 = pneg %p33
    %p40 = scmp.eq.s32.totalorder %s10, 1
    %p41 = por %p39, %p40
    %p42 = scmp.ne.s32.totalorder %s34, %s37
    %p43 = scmp.eq.s32.totalorder %s10, 0
    %p44 = por %p42, %p43
    %p45 = scmp.ne.s32.totalorder %s34, %s37
    %p46 = scmp.eq.s32.totalorder %s15, 1
    %p47 = por %p45, %p46
    %p48 = scmp.ne.s32.totalorder %s37, %s38
    %p49 = scmp.eq.s32.totalorder %s15, 0
    %p50 = por %p48, %p49
    %p51 = scmp.ne.s32.totalorder %s37, %s38
    %p52 = scmp.eq.s32.totalorder %s16, 1
    %p53 = por %p51, %p52
    %p55 = scmp.ne.s32.totalorder %s38, %s54
    %p56 = scmp.eq.s32.totalorder %s16, 0
    %p57 = por %p55, %p56
    %s59 = sadd.s32 %s58, 1
    %p62 = scmp.eq.s32.totalorder %s10, 1
    %p63 = scmp.ne.s32.totalorder %s58, %s60
    %p64 = scmp.eq.s32.totalorder %s10, 0
    %p65 = por %p63, %p64
    %p66 = scmp.ne.s32.totalorder %s58, %s60
    %p67 = scmp.eq.s32.totalorder %s15, 1
    %p68 = por %p66, %p67
    %p69 = scmp.ne.s32.totalorder %s60, %s61
    %p70 = scmp.eq.s32.totalorder %s15, 0
    %p71 = por %p69, %p70
    %p72 = scmp.ne.s32.totalorder %s60, %s61
    %p73 = scmp.eq.s32.totalorder %s16, 1
    %p74 = por %p72, %p73
    %p76 = scmp.ne.s32.totalorder %s61, %s75
    %p77 = scmp.eq.s32.totalorder %s16, 0
    %p78 = por %p76, %p77
    %s79 = ssub.s32 %s17, %s29
    %p80 = scmp.eq.s32.totalorder %s79, 0
    %s82 = sadd.s32 %s81, 1
    %s83 = scalar_select %p80, %s81, %s82
    %p86 = pneg %p80
    %p87 = scmp.eq.s32.totalorder %s10, 1
    %p88 = por %p86, %p87
    %p89 = scmp.ne.s32.totalorder %s81, %s84
    %p90 = scmp.eq.s32.totalorder %s10, 0
    %p91 = por %p89, %p90
    %p92 = scmp.ne.s32.totalorder %s81, %s84
    %p93 = scmp.eq.s32.totalorder %s15, 1
    %p94 = por %p92, %p93
    %p95 = scmp.ne.s32.totalorder %s84, %s85
    %p96 = scmp.eq.s32.totalorder %s15, 0
    %p97 = por %p95, %p96
    %p98 = scmp.ne.s32.totalorder %s84, %s85
    %p99 = scmp.eq.s32.totalorder %s16, 1
    %p100 = por %p98, %p99
    %p102 = scmp.ne.s32.totalorder %s85, %s101
    %p103 = scmp.eq.s32.totalorder %s16, 0
    %p104 = por %p102, %p103
    %s105 = ssub.s32 %s17, %s29
    %p106 = scmp.eq.s32.totalorder %s105, 0
    %s108 = sadd.s32 %s107, 1
    %s109 = scalar_select %p106, %s107, %s108
    %p112 = pneg %p106
    %p113 = scmp.eq.s32.totalorder %s10, 1
    %p114 = por %p112, %p113
    %p115 = scmp.ne.s32.totalorder %s107, %s110
    %p116 = scmp.eq.s32.totalorder %s10, 0
    %p117 = por %p115, %p116
    %p118 = scmp.ne.s32.totalorder %s107, %s110
    %p119 = scmp.eq.s32.totalorder %s15, 1
    %p120 = por %p118, %p119
    %p121 = scmp.ne.s32.totalorder %s110, %s111
    %p122 = scmp.eq.s32.totalorder %s15, 0
    %p123 = por %p121, %p122
    %p124 = scmp.ne.s32.totalorder %s110, %s111
    %p125 = scmp.eq.s32.totalorder %s16, 1
    %p126 = por %p124, %p125
    %p128 = scmp.ne.s32.totalorder %s111, %s127
    %p129 = scmp.eq.s32.totalorder %s16, 0
    %p130 = por %p128, %p129
    %p131 = scmp.le.s32.totalorder 1, %s10
    %p132 = scmp.lt.s32.totalorder %s10, 3
    %p133 = pnand %p131, %p132
    %p134 = pneg %p133
    // Predicated region
    $region9: #{upsample_block_forward.2} parent=5 // pred_check
      _
    $region10: #{upsample_block_forward.2} parent=5 // pred_check_branch
      %136 = sbr.rel (%p133) target = $region12
    $region11: #{upsample_block_forward.2} parent=5 // pred_region
      %s137 = ssub.s32 %s10, 1
      // Predicated region
      $region13: #{upsample_block_forward.2} parent=11 // pred_check
        %p138 = pneg %p71
      $region14: #{upsample_block_forward.2} parent=11 // pred_check_branch
        %140 = sbr.rel (%p138) target = $region16
      $region15: #{upsample_block_forward.2} parent=11 // pred_region
        _
      $region16: #{upsample_block_forward.2} parent=11 // pred_fallthru
        _
    $region12: #{upsample_block_forward.2} parent=5 // pred_fallthru
      _
    %p141 = scmp.lt.s32.totalorder %s10, 2
    // Predicated region
    $region17: #{upsample_block_forward.2} parent=5 // pred_check
      %p142 = pneg %p141
    $region18: #{upsample_block_forward.2} parent=5 // pred_check_branch
      %144 = sbr.rel (%p142) target = $region20
    $region19: #{upsample_block_forward.2} parent=5 // pred_region
      // Predicated region
      $region21: #{upsample_block_forward.2} parent=19 // pred_check
        %p145 = pneg %p44
      $region22: #{upsample_block_forward.2} parent=19 // pred_check_branch
        %147 = sbr.rel (%p145) target = $region24
      $region23: #{upsample_block_forward.2} parent=19 // pred_region
        %s148 = smul.u32 32, %s18
        %p149 = scmp.lt.s32.totalorder %s17, 1
        %s150 = scalar_select %p149, %s17, 1
        %p151 = scmp.lt.s32.totalorder %s148, 31
        %s152 = scalar_select %p151, %s148, 31
        %s153 = smul.addr %s150, 32
        %s154 = sadd.s32 %s152, %s153
        %s155 = smul.addr %s154, 4
        %s156 = scalar_lea.vmem %s0, %s155
        %s157 = smul.u32 32, %s18
      $region24: #{upsample_block_forward.2} parent=19 // pred_fallthru
        _
    $region20: #{upsample_block_forward.2} parent=5 // pred_fallthru
      _
    %p158 = scmp.le.s32.totalorder 1, %s10
    %p159 = scmp.lt.s32.totalorder %s10, 3
    %p160 = pnand %p158, %p159
    %p161 = pneg %p160
    // Predicated region
    $region25: #{upsample_block_forward.2} parent=5 // pred_check
      _
    $region26: #{upsample_block_forward.2} parent=5 // pred_check_branch
      %163 = sbr.rel (%p160) target = $region28
    $region27: #{upsample_block_forward.2} parent=5 // pred_region
      %s164 = ssub.s32 %s10, 1
      %s165 = smul.u32 32, %s20
      %p166 = scmp.lt.s32.totalorder %s19, 1
      %s167 = scalar_select %p166, %s19, 1
      %p168 = scmp.lt.s32.totalorder %s165, 31
      %s169 = scalar_select %p168, %s165, 31
      %s170 = smul.addr %s167, 32
      %s171 = sadd.s32 %s169, %s170
      %s172 = smul.addr %s171, 4
      %s173 = scalar_lea.vmem %s0, %s172
      %p174 = pneg %p50
      %p175 = pneg %p47
      %p176 = pneg %p71
      %p177 = pneg %p68
      %p178 = pneg %p97
      %p179 = pneg %p94
      %p180 = scmp.lt.s32.totalorder %s19, 1
      %s181 = scalar_select %p180, %s19, 1
      %s182 = smul.addr %s181, 2
      %s183 = scalar_lea.vmem %s2, %s182
      %p184 = pneg %p123
      %p185 = pneg %p120
      %p186 = scmp.lt.s32.totalorder %s19, 1
      %s187 = scalar_select %p186, %s19, 1
      %s188 = smul.addr %s187, 2
      %s189 = scalar_lea.vmem %s3, %s188
      %s190 = smul.u32 32, %s20
      %p191 = scmp.lt.s32.totalorder %s19, 1
      %s192 = scalar_select %p191, %s19, 1
      %p193 = scmp.lt.s32.totalorder %s190, 31
      %s194 = scalar_select %p193, %s190, 31
      %s195 = smul.addr %s192, 32
      %s196 = sadd.s32 %s194, %s195
      %s197 = smul.addr %s196, 4
      %s198 = scalar_lea.vmem %s0, %s197
      %s199 = smul.u32 32, %s20
      %p200 = scmp.lt.s32.totalorder %s19, 1
      %s201 = scalar_select %p200, %s19, 1
      %s202 = smul.addr %s201, 2
      %s203 = scalar_lea.vmem %s2, %s202
      %p204 = scmp.lt.s32.totalorder %s19, 1
      %s205 = scalar_select %p204, %s19, 1
      %s206 = smul.addr %s205, 2
      %s207 = scalar_lea.vmem %s3, %s206
      %p209 = scmp.eq.s32.totalorder %s20, 0
      // Predicated region
      $region29: #{upsample_block_forward.2} parent=27 // pred_check
        %p210 = pneg %p209
      $region30: #{upsample_block_forward.2} parent=27 // pred_check_branch
        %212 = sbr.rel (%p210) target = $region32
      $region31: #{upsample_block_forward.2} parent=27 // pred_region
        %v213 = vlaneseq
        %vm214 = vcmp.ge.s32.totalorder %v213, 0
        %vm215 = vcmp.lt.s32.totalorder %v213, 256
        %vm216 = vmand %vm214, %vm215
        %217 = vst.msk [vmem:[%s203] sm:$0x3] %vm216, 0.0
        %218 = vst.msk [vmem:[%s207] sm:$0x3] %vm216, 0.0
      $region32: #{upsample_block_forward.2} parent=27 // pred_fallthru
        _
      %v219 = vld [vmem:[%s198] sm:$0xf]
      %v220 = vld [vmem:[%s198 + $0x4] sm:$0xf]
      %v221 = vld [vmem:[%s198 + $0x8] sm:$0xf]
      %v222 = vld [vmem:[%s198 + $0xc] sm:$0xf]
      %v223 = vld [vmem:[%s198 + $0x10] sm:$0xf]
      %v224 = vld [vmem:[%s198 + $0x14] sm:$0xf]
      %v225 = vld [vmem:[%s198 + $0x18] sm:$0xf]
      %v226 = vld [vmem:[%s198 + $0x1c] sm:$0xf]
      %v227 = vld [vmem:[%s198 + $0x20] sm:$0xf]
      %v228 = vld [vmem:[%s198 + $0x24] sm:$0xf]
      %v229 = vld [vmem:[%s198 + $0x28] sm:$0xf]
      %v230 = vld [vmem:[%s198 + $0x2c] sm:$0xf]
      %v231 = vld [vmem:[%s198 + $0x30] sm:$0xf]
      %v232 = vld [vmem:[%s198 + $0x34] sm:$0xf]
      %v233 = vld [vmem:[%s198 + $0x38] sm:$0xf]
      %v234 = vld [vmem:[%s198 + $0x3c] sm:$0xf]
      %v235 = vld [vmem:[%s198 + $0x40] sm:$0xf]
      %v236 = vld [vmem:[%s198 + $0x44] sm:$0xf]
      %v237 = vld [vmem:[%s198 + $0x48] sm:$0xf]
      %v238 = vld [vmem:[%s198 + $0x4c] sm:$0xf]
      %v239 = vld [vmem:[%s198 + $0x50] sm:$0xf]
      %v240 = vld [vmem:[%s198 + $0x54] sm:$0xf]
      %v241 = vld [vmem:[%s198 + $0x58] sm:$0xf]
      %v242 = vld [vmem:[%s198 + $0x5c] sm:$0xf]
      %v243 = vld [vmem:[%s198 + $0x60] sm:$0xf]
      %v244 = vld [vmem:[%s198 + $0x64] sm:$0xf]
      %v245 = vld [vmem:[%s198 + $0x68] sm:$0xf]
      %v246 = vld [vmem:[%s198 + $0x6c] sm:$0xf]
      %v247 = vld [vmem:[%s198 + $0x70] sm:$0xf]
      %v248 = vld [vmem:[%s198 + $0x74] sm:$0xf]
      %v249 = vld [vmem:[%s198 + $0x78] sm:$0xf]
      %v250 = vld [vmem:[%s198 + $0x7c] sm:$0xf]
      %v251 = vld [vmem:[%s1] sm:$0xff]
      %v252 = vld [vmem:[%s1 + $0x8] sm:$0xff]
      %v253 = vld [vmem:[%s1 + $0x10] sm:$0xff]
      %v254 = vld [vmem:[%s1 + $0x18] sm:$0xff]
      %v255 = vld [vmem:[%s1 + $0x20] sm:$0x33]
      %v288 = vunpack.c.l.b16 %v219
      %v289 = vunpack.c.l.b16 %v220
      %v290 = vunpack.c.l.b16 %v221
      %v291 = vunpack.c.l.b16 %v222
      %v292 = vunpack.c.l.b16 %v223
      %v293 = vunpack.c.l.b16 %v224
      %v294 = vunpack.c.l.b16 %v225
      %v295 = vunpack.c.l.b16 %v226
      %v296 = vunpack.c.l.b16 %v227
      %v297 = vunpack.c.l.b16 %v228
      %v298 = vunpack.c.l.b16 %v229
      %v299 = vunpack.c.l.b16 %v230
      %v300 = vunpack.c.l.b16 %v231
      %v301 = vunpack.c.l.b16 %v232
      %v302 = vunpack.c.l.b16 %v233
      %v303 = vunpack.c.l.b16 %v234
      %v304 = vunpack.c.l.b16 %v235
      %v305 = vunpack.c.l.b16 %v236
      %v306 = vunpack.c.l.b16 %v237
      %v307 = vunpack.c.l.b16 %v238
      %v308 = vunpack.c.l.b16 %v239
      %v309 = vunpack.c.l.b16 %v240
      %v310 = vunpack.c.l.b16 %v241
      %v311 = vunpack.c.l.b16 %v242
      %v312 = vunpack.c.l.b16 %v243
      %v313 = vunpack.c.l.b16 %v244
      %v314 = vunpack.c.l.b16 %v245
      %v315 = vunpack.c.l.b16 %v246
      %v316 = vunpack.c.l.b16 %v247
      %v317 = vunpack.c.l.b16 %v248
      %v318 = vunpack.c.l.b16 %v249
      %v319 = vunpack.c.l.b16 %v250
      %v320 = vpack.c.b16 %v289, %v288
      %v321 = vpack.c.b16 %v291, %v290
      %v322 = vpack.c.b16 %v293, %v292
      %v323 = vpack.c.b16 %v295, %v294
      %v324 = vpack.c.b16 %v297, %v296
      %v325 = vpack.c.b16 %v299, %v298
      %v326 = vpack.c.b16 %v301, %v300
      %v327 = vpack.c.b16 %v303, %v302
      %v328 = vpack.c.b16 %v305, %v304
      %v329 = vpack.c.b16 %v307, %v306
      %v330 = vpack.c.b16 %v309, %v308
      %v331 = vpack.c.b16 %v311, %v310
      %v332 = vpack.c.b16 %v313, %v312
      %v333 = vpack.c.b16 %v315, %v314
      %v334 = vpack.c.b16 %v317, %v316
      %v335 = vpack.c.b16 %v319, %v318
      %v341 = vunpack.c.l.b16 %v251
      %v342 = vunpack.c.h.b16 %v251
      %v343 = vunpack.c.l.b16 %v252
      %v344 = vunpack.c.h.b16 %v252
      %v345 = vunpack.c.l.b16 %v253
      %v346 = vunpack.c.h.b16 %v253
      %v347 = vunpack.c.l.b16 %v254
      %v348 = vunpack.c.h.b16 %v254
      %v349 = vunpack.c.l.b16 %v255
      %v350 = vunpack.c.h.b16 %v255
      %v351 = vpack.c.b16 %v343, %v341
      %v352 = vpack.c.b16 %v344, %v342
      %v353 = vpack.c.b16 %v347, %v345
      %v354 = vpack.c.b16 %v348, %v346
      %v355 = vpack.c.b16 %v349, %v349
      %v356 = vpack.c.b16 %v350, %v350
      %vm361 = vcmask 293888
      %v363 = vsel %vm361, %v320, 0
      %v366 = vsel %vm361, %v321, 0
      %v369 = vsel %vm361, %v322, 0
      %v372 = vsel %vm361, %v323, 0
      %v375 = vsel %vm361, %v324, 0
      %v378 = vsel %vm361, %v325, 0
      %v381 = vsel %vm361, %v326, 0
      %v384 = vsel %vm361, %v327, 0
      %v387 = vsel %vm361, %v328, 0
      %v390 = vsel %vm361, %v329, 0
      %v393 = vsel %vm361, %v330, 0
      %v396 = vsel %vm361, %v331, 0
      %v399 = vsel %vm361, %v332, 0
      %v402 = vsel %vm361, %v333, 0
      %v405 = vsel %vm361, %v334, 0
      %v408 = vsel %vm361, %v335, 0
      %vm410 = vcmask 1041408
      %v412 = vsel %vm410, %v355, 0
      %v415 = vsel %vm410, %v356, 0
      %417 = vmatprep.subr.bf16.mxu0 0
      %418 = vmatpush1.bf16.msra.mxu0 0
      %419 = vmatprep.subr.bf16.mxu0 0
      %420 = vmatpush1.bf16.msra.mxu0 0
      %421 = vmatprep.subr.bf16.mxu0 0
      %422 = vmatpush1.bf16.msra.mxu0 0
      %423 = vmatprep.subr.bf16.mxu0 0
      %424 = vmatpush1.bf16.msra.mxu0 0
      %425 = vmatprep.subr.bf16.mxu0 0
      %426 = vmatpush1.bf16.msra.mxu0 0
      %427 = vmatprep.subr.bf16.mxu0 %v415
      %428 = vmatpush1.bf16.msra.mxu0 %v412
      %429 = vmatprep.subr.bf16.mxu0 %v354
      %430 = vmatpush1.bf16.msra.mxu0 %v353
      %431 = vmatprep.subr.bf16.mxu0 %v352
      %432 = vmatpush1.bf16.msra.mxu0 %v351
      %433 = vmatprep.subr.bf16.mxu0 0
      %434 = vmatpush2.bf16.msra.mxu0 0
      %435 = vmatprep.subr.bf16.mxu0 0
      %436 = vmatpush2.bf16.msra.mxu0 0
      %437 = vmatprep.subr.bf16.mxu0 0
      %438 = vmatpush2.bf16.msra.mxu0 0
      %439 = vmatprep.subr.bf16.mxu0 0
      %440 = vmatpush2.bf16.msra.mxu0 0
      %441 = vmatprep.subr.bf16.mxu0 0
      %442 = vmatpush2.bf16.msra.mxu0 0
      %443 = vmatprep.subr.bf16.mxu0 0
      %444 = vmatpush2.bf16.msra.mxu0 0
      %445 = vmatprep.subr.bf16.mxu0 0
      %446 = vmatpush2.bf16.msra.mxu0 0
      %447 = vmatprep.subr.bf16.mxu0 0
      %448 = vmatpush2.bf16.msra.mxu0 0
      %449 = vmatprep.mubr.bf16.mxu0 0
      %450 = vmatmul.mubr.bf16.gmra.mxu0 %v363
      %v451 = vpop.f32.mrf.mxu0
      %v452 = vadd.f32 0.0, %v451
      %v453 = vpop.f32.mrf.mxu0
      %v454 = vadd.f32 0.0, %v453
      %v455 = vpop.f32.mrf.mxu0
      %v456 = vadd.f32 0.0, %v455
      %v457 = vpop.f32.mrf.mxu0
      %v458 = vadd.f32 0.0, %v457
      %459 = vmatprep.mubr.bf16.mxu0 0
      %460 = vmatmul.mubr.bf16.gmra.mxu0 %v366
      %v461 = vpop.f32.mrf.mxu0
      %v462 = vadd.f32 0.0, %v461
      %v463 = vpop.f32.mrf.mxu0
      %v464 = vadd.f32 0.0, %v463
      %v465 = vpop.f32.mrf.mxu0
      %v466 = vadd.f32 0.0, %v465
      %v467 = vpop.f32.mrf.mxu0
      %v468 = vadd.f32 0.0, %v467
      %469 = vmatprep.mubr.bf16.mxu0 0
      %470 = vmatmul.mubr.bf16.gmra.mxu0 %v369
      %v471 = vpop.f32.mrf.mxu0
      %v472 = vadd.f32 0.0, %v471
      %v473 = vpop.f32.mrf.mxu0
      %v474 = vadd.f32 0.0, %v473
      %v475 = vpop.f32.mrf.mxu0
      %v476 = vadd.f32 0.0, %v475
      %v477 = vpop.f32.mrf.mxu0
      %v478 = vadd.f32 0.0, %v477
      %479 = vmatprep.mubr.bf16.mxu0 0
      %480 = vmatmul.mubr.bf16.gmra.mxu0 %v372
      %v481 = vpop.f32.mrf.mxu0
      %v482 = vadd.f32 0.0, %v481
      %v483 = vpop.f32.mrf.mxu0
      %v484 = vadd.f32 0.0, %v483
      %v485 = vpop.f32.mrf.mxu0
      %v486 = vadd.f32 0.0, %v485
      %v487 = vpop.f32.mrf.mxu0
      %v488 = vadd.f32 0.0, %v487
      %489 = vmatprep.mubr.bf16.mxu0 0
      %490 = vmatmul.mubr.bf16.gmra.mxu0 %v375
      %v491 = vpop.f32.mrf.mxu0
      %v492 = vadd.f32 0.0, %v491
      %v493 = vpop.f32.mrf.mxu0
      %v494 = vadd.f32 0.0, %v493
      %v495 = vpop.f32.mrf.mxu0
      %v496 = vadd.f32 0.0, %v495
      %v497 = vpop.f32.mrf.mxu0
      %v498 = vadd.f32 0.0, %v497
      %499 = vmatprep.mubr.bf16.mxu0 0
      %500 = vmatmul.mubr.bf16.gmra.mxu0 %v378
      %v501 = vpop.f32.mrf.mxu0
      %v502 = vadd.f32 0.0, %v501
      %v503 = vpop.f32.mrf.mxu0
      %v504 = vadd.f32 0.0, %v503
      %v505 = vpop.f32.mrf.mxu0
      %v506 = vadd.f32 0.0, %v505
      %v507 = vpop.f32.mrf.mxu0
      %v508 = vadd.f32 0.0, %v507
      %509 = vmatprep.mubr.bf16.mxu0 0
      %510 = vmatmul.mubr.bf16.gmra.mxu0 %v381
      %v511 = vpop.f32.mrf.mxu0
      %v512 = vadd.f32 0.0, %v511
      %v513 = vpop.f32.mrf.mxu0
      %v514 = vadd.f32 0.0, %v513
      %v515 = vpop.f32.mrf.mxu0
      %v516 = vadd.f32 0.0, %v515
      %v517 = vpop.f32.mrf.mxu0
      %v518 = vadd.f32 0.0, %v517
      %519 = vmatprep.mubr.bf16.mxu0 0
      %520 = vmatmul.mubr.bf16.gmra.mxu0 %v384
      %v521 = vpop.f32.mrf.mxu0
      %v522 = vadd.f32 0.0, %v521
      %v523 = vpop.f32.mrf.mxu0
      %v524 = vadd.f32 0.0, %v523
      %v525 = vpop.f32.mrf.mxu0
      %v526 = vadd.f32 0.0, %v525
      %v527 = vpop.f32.mrf.mxu0
      %v528 = vadd.f32 0.0, %v527
      %529 = vmatprep.mubr.bf16.mxu0 0
      %530 = vmatmul.mubr.bf16.gmra.mxu0 %v387
      %v531 = vpop.f32.mrf.mxu0
      %v532 = vadd.f32 0.0, %v531
      %v533 = vpop.f32.mrf.mxu0
      %v534 = vadd.f32 0.0, %v533
      %v535 = vpop.f32.mrf.mxu0
      %v536 = vadd.f32 0.0, %v535
      %v537 = vpop.f32.mrf.mxu0
      %v538 = vadd.f32 0.0, %v537
      %539 = vmatprep.mubr.bf16.mxu0 0
      %540 = vmatmul.mubr.bf16.gmra.mxu0 %v390
      %v541 = vpop.f32.mrf.mxu0
      %v542 = vadd.f32 0.0, %v541
      %v543 = vpop.f32.mrf.mxu0
      %v544 = vadd.f32 0.0, %v543
      %v545 = vpop.f32.mrf.mxu0
      %v546 = vadd.f32 0.0, %v545
      %v547 = vpop.f32.mrf.mxu0
      %v548 = vadd.f32 0.0, %v547
      %549 = vmatprep.mubr.bf16.mxu0 0
      %550 = vmatmul.mubr.bf16.gmra.mxu0 %v393
      %v551 = vpop.f32.mrf.mxu0
      %v552 = vadd.f32 0.0, %v551
      %v553 = vpop.f32.mrf.mxu0
      %v554 = vadd.f32 0.0, %v553
      %v555 = vpop.f32.mrf.mxu0
      %v556 = vadd.f32 0.0, %v555
      %v557 = vpop.f32.mrf.mxu0
      %v558 = vadd.f32 0.0, %v557
      %559 = vmatprep.mubr.bf16.mxu0 0
      %560 = vmatmul.mubr.bf16.gmra.mxu0 %v396
      %v561 = vpop.f32.mrf.mxu0
      %v562 = vadd.f32 0.0, %v561
      %v563 = vpop.f32.mrf.mxu0
      %v564 = vadd.f32 0.0, %v563
      %v565 = vpop.f32.mrf.mxu0
      %v566 = vadd.f32 0.0, %v565
      %v567 = vpop.f32.mrf.mxu0
      %v568 = vadd.f32 0.0, %v567
      %569 = vmatprep.mubr.bf16.mxu0 0
      %570 = vmatmul.mubr.bf16.gmra.mxu0 %v399
      %v571 = vpop.f32.mrf.mxu0
      %v572 = vadd.f32 0.0, %v571
      %v573 = vpop.f32.mrf.mxu0
      %v574 = vadd.f32 0.0, %v573
      %v575 = vpop.f32.mrf.mxu0
      %v576 = vadd.f32 0.0, %v575
      %v577 = vpop.f32.mrf.mxu0
      %v578 = vadd.f32 0.0, %v577
      %579 = vmatprep.mubr.bf16.mxu0 0
      %580 = vmatmul.mubr.bf16.gmra.mxu0 %v402
      %v581 = vpop.f32.mrf.mxu0
      %v582 = vadd.f32 0.0, %v581
      %v583 = vpop.f32.mrf.mxu0
      %v584 = vadd.f32 0.0, %v583
      %v585 = vpop.f32.mrf.mxu0
      %v586 = vadd.f32 0.0, %v585
      %v587 = vpop.f32.mrf.mxu0
      %v588 = vadd.f32 0.0, %v587
      %589 = vmatprep.mubr.bf16.mxu0 0
      %590 = vmatmul.mubr.bf16.gmra.mxu0 %v405
      %v591 = vpop.f32.mrf.mxu0
      %v592 = vadd.f32 0.0, %v591
      %v593 = vpop.f32.mrf.mxu0
      %v594 = vadd.f32 0.0, %v593
      %v595 = vpop.f32.mrf.mxu0
      %v596 = vadd.f32 0.0, %v595
      %v597 = vpop.f32.mrf.mxu0
      %v598 = vadd.f32 0.0, %v597
      %599 = vmatprep.mubr.bf16.mxu0 0
      %600 = vmatmul.mubr.bf16.gmra.mxu0 %v408
      %v601 = vpop.f32.mrf.mxu0
      %v602 = vadd.f32 0.0, %v601
      %v603 = vpop.f32.mrf.mxu0
      %v604 = vadd.f32 0.0, %v603
      %v605 = vpop.f32.mrf.mxu0
      %v606 = vadd.f32 0.0, %v605
      %v607 = vpop.f32.mrf.mxu0
      %v608 = vadd.f32 0.0, %v607
      %609 = vdwg.mxu0
      %v610 = vld [vmem:[%s203] sm:$0x3]
      %v611 = vadd.f32 %v452, %v456
      %v612 = vadd.f32 %v611, %v462
      %v613 = vadd.f32 %v612, %v466
      %v614 = vadd.f32 %v613, %v472
      %v615 = vadd.f32 %v614, %v476
      %v616 = vadd.f32 %v615, %v482
      %v617 = vadd.f32 %v616, %v486
      %v618 = vadd.f32 %v617, %v492
      %v619 = vadd.f32 %v618, %v496
      %v620 = vadd.f32 %v619, %v502
      %v621 = vadd.f32 %v620, %v506
      %v622 = vadd.f32 %v621, %v512
      %v623 = vadd.f32 %v622, %v516
      %v624 = vadd.f32 %v623, %v522
      %v625 = vadd.f32 %v624, %v526
      %v626 = vadd.f32 %v625, %v532
      %v627 = vadd.f32 %v626, %v536
      %v628 = vadd.f32 %v627, %v542
      %v629 = vadd.f32 %v628, %v546
      %v630 = vadd.f32 %v629, %v552
      %v631 = vadd.f32 %v630, %v556
      %v632 = vadd.f32 %v631, %v562
      %v633 = vadd.f32 %v632, %v566
      %v634 = vadd.f32 %v633, %v572
      %v635 = vadd.f32 %v634, %v576
      %v636 = vadd.f32 %v635, %v582
      %v637 = vadd.f32 %v636, %v586
      %v638 = vadd.f32 %v637, %v592
      %v639 = vadd.f32 %v638, %v596
      %v640 = vadd.f32 %v639, %v602
      %v641 = vadd.f32 %v640, %v606
      %v642 = vrot.slane %v641, 4
      %v643 = vadd.f32 %v641, %v642
      %v644 = vrot.slane %v643, 2
      %v645 = vadd.f32 %v643, %v644
      %v646 = vrot.slane %v645, 1
      %v647 = vadd.f32 %v645, %v646
      %v648 = vadd.f32 %v454, %v458
      %v649 = vadd.f32 %v648, %v464
      %v650 = vadd.f32 %v649, %v468
      %v651 = vadd.f32 %v650, %v474
      %v652 = vadd.f32 %v651, %v478
      %v653 = vadd.f32 %v652, %v484
      %v654 = vadd.f32 %v653, %v488
      %v655 = vadd.f32 %v654, %v494
      %v656 = vadd.f32 %v655, %v498
      %v657 = vadd.f32 %v656, %v504
      %v658 = vadd.f32 %v657, %v508
      %v659 = vadd.f32 %v658, %v514
      %v660 = vadd.f32 %v659, %v518
      %v661 = vadd.f32 %v660, %v524
      %v662 = vadd.f32 %v661, %v528
      %v663 = vadd.f32 %v662, %v534
      %v664 = vadd.f32 %v663, %v538
      %v665 = vadd.f32 %v664, %v544
      %v666 = vadd.f32 %v665, %v548
      %v667 = vadd.f32 %v666, %v554
      %v668 = vadd.f32 %v667, %v558
      %v669 = vadd.f32 %v668, %v564
      %v670 = vadd.f32 %v669, %v568
      %v671 = vadd.f32 %v670, %v574
      %v672 = vadd.f32 %v671, %v578
      %v673 = vadd.f32 %v672, %v584
      %v674 = vadd.f32 %v673, %v588
      %v675 = vadd.f32 %v674, %v594
      %v676 = vadd.f32 %v675, %v598
      %v677 = vadd.f32 %v676, %v604
      %v678 = vadd.f32 %v677, %v608
      %v679 = vrot.slane %v678, 4
      %v680 = vadd.f32 %v678, %v679
      %v681 = vrot.slane %v680, 2
      %v682 = vadd.f32 %v680, %v681
      %v683 = vrot.slane %v682, 1
      %v684 = vadd.f32 %v682, %v683
      %v687 = vcombine.low %v647, %v684
      %v689 = vunpack.c.l.s4 1966171168
      %v690 = vunpack.c.0.s8 %v689
      %v691 = vlaneseq
      %v692 = vshrl.u32 %v691, 7
      %v693 = vsub.s32 %v690, %v692
      %v694 = vrot.slane %v687, %v693
      %v696 = vunpack.c.l.s4 1966171168
      %v697 = vunpack.c.0.s8 %v696
      %v698 = vlaneseq
      %v699 = vshrl.u32 %v698, 7
      %v700 = vsub.s32 %v697, %v699
      %v701 = vrot.slane %v694, %v700
      %v703 = vadd.f32 %v610, %v701
      %v704 = vlaneseq
      %vm705 = vcmp.ge.s32.totalorder %v704, 0
      %vm706 = vcmp.lt.s32.totalorder %v704, 256
      %vm707 = vmand %vm705, %vm706
      %708 = vst.msk [vmem:[%s203] sm:$0x3] %vm707, %v703
      %v709 = vld [vmem:[%s207] sm:$0x3]
      %v710 = vmul.f32 %v452, %v452
      %v711 = vmul.f32 %v454, %v454
      %v712 = vmul.f32 %v456, %v456
      %v713 = vmul.f32 %v458, %v458
      %v714 = vmul.f32 %v462, %v462
      %v715 = vmul.f32 %v464, %v464
      %v716 = vmul.f32 %v466, %v466
      %v717 = vmul.f32 %v468, %v468
      %v718 = vmul.f32 %v472, %v472
      %v719 = vmul.f32 %v474, %v474
      %v720 = vmul.f32 %v476, %v476
      %v721 = vmul.f32 %v478, %v478
      %v722 = vmul.f32 %v482, %v482
      %v723 = vmul.f32 %v484, %v484
      %v724 = vmul.f32 %v486, %v486
      %v725 = vmul.f32 %v488, %v488
      %v726 = vmul.f32 %v492, %v492
      %v727 = vmul.f32 %v494, %v494
      %v728 = vmul.f32 %v496, %v496
      %v729 = vmul.f32 %v498, %v498
      %v730 = vmul.f32 %v502, %v502
      %v731 = vmul.f32 %v504, %v504
      %v732 = vmul.f32 %v506, %v506
      %v733 = vmul.f32 %v508, %v508
      %v734 = vmul.f32 %v512, %v512
      %v735 = vmul.f32 %v514, %v514
      %v736 = vmul.f32 %v516, %v516
      %v737 = vmul.f32 %v518, %v518
      %v738 = vmul.f32 %v522, %v522
      %v739 = vmul.f32 %v524, %v524
      %v740 = vmul.f32 %v526, %v526
      %v741 = vmul.f32 %v528, %v528
      %v742 = vmul.f32 %v532, %v532
      %v743 = vmul.f32 %v534, %v534
      %v744 = vmul.f32 %v536, %v536
      %v745 = vmul.f32 %v538, %v538
      %v746 = vmul.f32 %v542, %v542
      %v747 = vmul.f32 %v544, %v544
      %v748 = vmul.f32 %v546, %v546
      %v749 = vmul.f32 %v548, %v548
      %v750 = vmul.f32 %v552, %v552
      %v751 = vmul.f32 %v554, %v554
      %v752 = vmul.f32 %v556, %v556
      %v753 = vmul.f32 %v558, %v558
      %v754 = vmul.f32 %v562, %v562
      %v755 = vmul.f32 %v564, %v564
      %v756 = vmul.f32 %v566, %v566
      %v757 = vmul.f32 %v568, %v568
      %v758 = vmul.f32 %v572, %v572
      %v759 = vmul.f32 %v574, %v574
      %v760 = vmul.f32 %v576, %v576
      %v761 = vmul.f32 %v578, %v578
      %v762 = vmul.f32 %v582, %v582
      %v763 = vmul.f32 %v584, %v584
      %v764 = vmul.f32 %v586, %v586
      %v765 = vmul.f32 %v588, %v588
      %v766 = vmul.f32 %v592, %v592
      %v767 = vmul.f32 %v594, %v594
      %v768 = vmul.f32 %v596, %v596
      %v769 = vmul.f32 %v598, %v598
      %v770 = vmul.f32 %v602, %v602
      %v771 = vmul.f32 %v604, %v604
      %v772 = vmul.f32 %v606, %v606
      %v773 = vmul.f32 %v608, %v608
      %v774 = vadd.f32 %v710, %v712
      %v775 = vadd.f32 %v774, %v714
      %v776 = vadd.f32 %v775, %v716
      %v777 = vadd.f32 %v776, %v718
      %v778 = vadd.f32 %v777, %v720
      %v779 = vadd.f32 %v778, %v722
      %v780 = vadd.f32 %v779, %v724
      %v781 = vadd.f32 %v780, %v726
      %v782 = vadd.f32 %v781, %v728
      %v783 = vadd.f32 %v782, %v730
      %v784 = vadd.f32 %v783, %v732
      %v785 = vadd.f32 %v784, %v734
      %v786 = vadd.f32 %v785, %v736
      %v787 = vadd.f32 %v786, %v738
      %v788 = vadd.f32 %v787, %v740
      %v789 = vadd.f32 %v788, %v742
      %v790 = vadd.f32 %v789, %v744
      %v791 = vadd.f32 %v790, %v746
      %v792 = vadd.f32 %v791, %v748
      %v793 = vadd.f32 %v792, %v750
      %v794 = vadd.f32 %v793, %v752
      %v795 = vadd.f32 %v794, %v754
      %v796 = vadd.f32 %v795, %v756
      %v797 = vadd.f32 %v796, %v758
      %v798 = vadd.f32 %v797, %v760
      %v799 = vadd.f32 %v798, %v762
      %v800 = vadd.f32 %v799, %v764
      %v801 = vadd.f32 %v800, %v766
      %v802 = vadd.f32 %v801, %v768
      %v803 = vadd.f32 %v802, %v770
      %v804 = vadd.f32 %v803, %v772
      %v805 = vrot.slane %v804, 4
      %v806 = vadd.f32 %v804, %v805
      %v807 = vrot.slane %v806, 2
      %v808 = vadd.f32 %v806, %v807
      %v809 = vrot.slane %v808, 1
      %v810 = vadd.f32 %v808, %v809
      %v811 = vadd.f32 %v711, %v713
      %v812 = vadd.f32 %v811, %v715
      %v813 = vadd.f32 %v812, %v717
      %v814 = vadd.f32 %v813, %v719
      %v815 = vadd.f32 %v814, %v721
      %v816 = vadd.f32 %v815, %v723
      %v817 = vadd.f32 %v816, %v725
      %v818 = vadd.f32 %v817, %v727
      %v819 = vadd.f32 %v818, %v729
      %v820 = vadd.f32 %v819, %v731
      %v821 = vadd.f32 %v820, %v733
      %v822 = vadd.f32 %v821, %v735
      %v823 = vadd.f32 %v822, %v737
      %v824 = vadd.f32 %v823, %v739
      %v825 = vadd.f32 %v824, %v741
      %v826 = vadd.f32 %v825, %v743
      %v827 = vadd.f32 %v826, %v745
      %v828 = vadd.f32 %v827, %v747
      %v829 = vadd.f32 %v828, %v749
      %v830 = vadd.f32 %v829, %v751
      %v831 = vadd.f32 %v830, %v753
      %v832 = vadd.f32 %v831, %v755
      %v833 = vadd.f32 %v832, %v757
      %v834 = vadd.f32 %v833, %v759
      %v835 = vadd.f32 %v834, %v761
      %v836 = vadd.f32 %v835, %v763
      %v837 = vadd.f32 %v836, %v765
      %v838 = vadd.f32 %v837, %v767
      %v839 = vadd.f32 %v838, %v769
      %v840 = vadd.f32 %v839, %v771
      %v841 = vadd.f32 %v840, %v773
      %v842 = vrot.slane %v841, 4
      %v843 = vadd.f32 %v841, %v842
      %v844 = vrot.slane %v843, 2
      %v845 = vadd.f32 %v843, %v844
      %v846 = vrot.slane %v845, 1
      %v847 = vadd.f32 %v845, %v846
      %v850 = vcombine.low %v810, %v847
      %v852 = vunpack.c.l.s4 1966171168
      %v853 = vunpack.c.0.s8 %v852
      %v854 = vlaneseq
      %v855 = vshrl.u32 %v854, 7
      %v856 = vsub.s32 %v853, %v855
      %v857 = vrot.slane %v850, %v856
      %v859 = vunpack.c.l.s4 1966171168
      %v860 = vunpack.c.0.s8 %v859
      %v861 = vlaneseq
      %v862 = vshrl.u32 %v861, 7
      %v863 = vsub.s32 %v860, %v862
      %v864 = vrot.slane %v857, %v863
      %v866 = vadd.f32 %v709, %v864
      %867 = vst.msk [vmem:[%s207] sm:$0x3] %vm707, %v866
      %p868 = scmp.lt.s32.totalorder %s19, 1
      %s869 = scalar_select %p868, %s19, 1
      %s870 = smul.addr %s869, 2
      %s871 = scalar_lea.vmem %s2, %s870
      %p872 = scmp.lt.s32.totalorder %s19, 1
      %s873 = scalar_select %p872, %s19, 1
      %s874 = smul.addr %s873, 2
      %s875 = scalar_lea.vmem %s3, %s874
      // Predicated region
      $region33: #{upsample_block_forward.2} parent=27 // pred_check
        %p876 = pneg %p94
      $region34: #{upsample_block_forward.2} parent=27 // pred_check_branch
        %878 = sbr.rel (%p876) target = $region36
      $region35: #{upsample_block_forward.2} parent=27 // pred_region
        _
      $region36: #{upsample_block_forward.2} parent=27 // pred_fallthru
        _
      // Predicated region
      $region37: #{upsample_block_forward.2} parent=27 // pred_check
        %p879 = pneg %p120
      $region38: #{upsample_block_forward.2} parent=27 // pred_check_branch
        %881 = sbr.rel (%p879) target = $region40
      $region39: #{upsample_block_forward.2} parent=27 // pred_region
        _
      $region40: #{upsample_block_forward.2} parent=27 // pred_fallthru
        _
    $region28: #{upsample_block_forward.2} parent=5 // pred_fallthru
      _
    %p882 = scmp.le.s32.totalorder 2, %s10
    // Predicated region
    $region41: #{upsample_block_forward.2} parent=5 // pred_check
      %p883 = pneg %p882
    $region42: #{upsample_block_forward.2} parent=5 // pred_check_branch
      %885 = sbr.rel (%p883) target = $region44
    $region43: #{upsample_block_forward.2} parent=5 // pred_region
      %s886 = ssub.s32 %s10, 2
      // Predicated region
      $region45: #{upsample_block_forward.2} parent=43 // pred_check
        %p887 = pneg %p100
      $region46: #{upsample_block_forward.2} parent=43 // pred_check_branch
        %889 = sbr.rel (%p887) target = $region48
      $region47: #{upsample_block_forward.2} parent=43 // pred_region
        %p890 = scmp.lt.s32.totalorder %s21, 1
        %s891 = scalar_select %p890, %s21, 1
        %s892 = smul.addr %s891, 2
        %s893 = scalar_lea.vmem %s2, %s892
      $region48: #{upsample_block_forward.2} parent=43 // pred_fallthru
        _
      // Predicated region
      $region49: #{upsample_block_forward.2} parent=43 // pred_check
        %p894 = pneg %p126
      $region50: #{upsample_block_forward.2} parent=43 // pred_check_branch
        %896 = sbr.rel (%p894) target = $region52
      $region51: #{upsample_block_forward.2} parent=43 // pred_region
        %p897 = scmp.lt.s32.totalorder %s21, 1
        %s898 = scalar_select %p897, %s21, 1
        %s899 = smul.addr %s898, 2
        %s900 = scalar_lea.vmem %s3, %s899
      $region52: #{upsample_block_forward.2} parent=43 // pred_fallthru
        _
    $region44: #{upsample_block_forward.2} parent=5 // pred_fallthru
      _
  $region6: #{upsample_block_forward.2} parent=0 // loop_footer
    %s14 = sadd.s32 1, %s10
  $region7: #{upsample_block_forward.2} parent=0 // loop_footer_branch
    %9 = sbr.rel target = $region3
  $region8: #{upsample_block_forward.2} parent=0 // loop_exit
    _

// kernel: upsample_block_forward.3
$region0: #{upsample_block_forward.3}
  #allocation0 [shape = 'u32[]', space=smem, size = 0x4, offset = 0x4, fixed_abs, tag = 'smem constant byte address 0x4 - core index']
  #allocation1 [shape = 'u32[144,128]{1,0:T(1,128)}', space=vmem, size = 0x12000, scoped, tag = 'internal scratch']
  %s0 = inlined_call_operand.vmem [shape: bf16[2,256,36], index: 0, kind: input, shape index: {}]
  %s1 = inlined_call_operand.vmem [shape: bf16[36,256], index: 1, kind: input, shape index: {}]
  %s2 = inlined_call_operand.vmem [shape: f32[1,256], index: 2, kind: input, shape index: {}]
  %s3 = inlined_call_operand.vmem [shape: f32[1,256], index: 3, kind: input, shape index: {}]
  %s4 = inlined_call_operand.vmem [shape: f32[1,256], index: 4, kind: input, shape index: {}]
  %s5 = inlined_call_operand.vmem [shape: f32[2,256,256], index: 5, kind: output, shape index: {}]
  %s6 = sld [smem:[#allocation0]]
  $region53: #{upsample_block_forward.3} parent=0
    _
  %s8 = ssub.s32 1, %s6
  %s9 = scalar_select 0, %s8, %s6
  loop: start=0, step=1, limit=4
  $region2: #{upsample_block_forward.3} parent=0 // loop_pre_header
    _
  $region3: #{upsample_block_forward.3} parent=0 // loop_header
    %s11 = sphi 0, %s15
    %p12 = scmp.ge.s32.totalorder %s11, 4
    %s18 = sphi 0, %s30
    %s19 = sphi 0, %s26
    %s20 = sphi 0, %s18
    %s21 = sphi 0, %s19
    %s22 = sphi 0, %s20
    %s23 = sphi 0, %s21
    %s35 = sphi 0, %s37
    %s38 = sphi 0, %s35
    %s39 = sphi 0, %s38
    %s55 = sphi 0, %s39
    %s59 = sphi 0, %s59
    %s61 = sphi 0, %s59
    %s62 = sphi 0, %s61
    %s76 = sphi 0, %s62
    %s80 = sphi 0, %s80
    %s82 = sphi 0, %s80
    %s83 = sphi 0, %s82
    %s97 = sphi 0, %s83
    %s101 = sphi 0, %s101
    %s103 = sphi 0, %s101
    %s104 = sphi 0, %s103
    %s118 = sphi 0, %s104
    %s122 = sphi 0, %s122
    %s124 = sphi 0, %s122
    %s125 = sphi 0, %s124
    %s139 = sphi 0, %s125
    %s147 = sphi 0, %s149
    %s150 = sphi 0, %s147
    %s151 = sphi 0, %s150
    %s167 = sphi 0, %s151
  $region4: #{upsample_block_forward.3} parent=0 // loop_header_branch
    %14 = sbr.rel (%p12) target = $region8
  $region5: #{upsample_block_forward.3} parent=0 // loop_body
    %s16 = ssub.s32 %s11, 1
    %s17 = ssub.s32 %s11, 2
    %s24 = sadd.s32 1, %s19
    %p25 = scmp.ge.s32.totalorder %s24, 1
    %s26 = scalar_select %p25, 0, %s24
    %s27 = sadd.s32 1, %s18
    %s28 = scalar_select %p25, %s27, %s18
    %p29 = scmp.ge.s32.totalorder %s28, 2
    %s30 = scalar_select %p29, 0, %s28
    %s31 = ssub.s32 %s18, %s30
    %s32 = ssub.s32 %s19, %s26
    %s33 = sor.u32 %s31, %s32
    %p34 = scmp.eq.s32.totalorder %s33, 0
    %s36 = sadd.s32 %s35, 1
    %s37 = scalar_select %p34, %s35, %s36
    %p40 = pneg %p34
    %p41 = scmp.eq.s32.totalorder %s11, 1
    %p42 = por %p40, %p41
    %p43 = scmp.ne.s32.totalorder %s35, %s38
    %p44 = scmp.eq.s32.totalorder %s11, 0
    %p45 = por %p43, %p44
    %p46 = scmp.ne.s32.totalorder %s35, %s38
    %p47 = scmp.eq.s32.totalorder %s16, 1
    %p48 = por %p46, %p47
    %p49 = scmp.ne.s32.totalorder %s38, %s39
    %p50 = scmp.eq.s32.totalorder %s16, 0
    %p51 = por %p49, %p50
    %p52 = scmp.ne.s32.totalorder %s38, %s39
    %p53 = scmp.eq.s32.totalorder %s17, 1
    %p54 = por %p52, %p53
    %p56 = scmp.ne.s32.totalorder %s39, %s55
    %p57 = scmp.eq.s32.totalorder %s17, 0
    %p58 = por %p56, %p57
    %s60 = sadd.s32 %s59, 1
    %p63 = scmp.eq.s32.totalorder %s11, 1
    %p64 = scmp.ne.s32.totalorder %s59, %s61
    %p65 = scmp.eq.s32.totalorder %s11, 0
    %p66 = por %p64, %p65
    %p67 = scmp.ne.s32.totalorder %s59, %s61
    %p68 = scmp.eq.s32.totalorder %s16, 1
    %p69 = por %p67, %p68
    %p70 = scmp.ne.s32.totalorder %s61, %s62
    %p71 = scmp.eq.s32.totalorder %s16, 0
    %p72 = por %p70, %p71
    %p73 = scmp.ne.s32.totalorder %s61, %s62
    %p74 = scmp.eq.s32.totalorder %s17, 1
    %p75 = por %p73, %p74
    %p77 = scmp.ne.s32.totalorder %s62, %s76
    %p78 = scmp.eq.s32.totalorder %s17, 0
    %p79 = por %p77, %p78
    %s81 = sadd.s32 %s80, 1
    %p84 = scmp.eq.s32.totalorder %s11, 1
    %p85 = scmp.ne.s32.totalorder %s80, %s82
    %p86 = scmp.eq.s32.totalorder %s11, 0
    %p87 = por %p85, %p86
    %p88 = scmp.ne.s32.totalorder %s80, %s82
    %p89 = scmp.eq.s32.totalorder %s16, 1
    %p90 = por %p88, %p89
    %p91 = scmp.ne.s32.totalorder %s82, %s83
    %p92 = scmp.eq.s32.totalorder %s16, 0
    %p93 = por %p91, %p92
    %p94 = scmp.ne.s32.totalorder %s82, %s83
    %p95 = scmp.eq.s32.totalorder %s17, 1
    %p96 = por %p94, %p95
    %p98 = scmp.ne.s32.totalorder %s83, %s97
    %p99 = scmp.eq.s32.totalorder %s17, 0
    %p100 = por %p98, %p99
    %s102 = sadd.s32 %s101, 1
    %p105 = scmp.eq.s32.totalorder %s11, 1
    %p106 = scmp.ne.s32.totalorder %s101, %s103
    %p107 = scmp.eq.s32.totalorder %s11, 0
    %p108 = por %p106, %p107
    %p109 = scmp.ne.s32.totalorder %s101, %s103
    %p110 = scmp.eq.s32.totalorder %s16, 1
    %p111 = por %p109, %p110
    %p112 = scmp.ne.s32.totalorder %s103, %s104
    %p113 = scmp.eq.s32.totalorder %s16, 0
    %p114 = por %p112, %p113
    %p115 = scmp.ne.s32.totalorder %s103, %s104
    %p116 = scmp.eq.s32.totalorder %s17, 1
    %p117 = por %p115, %p116
    %p119 = scmp.ne.s32.totalorder %s104, %s118
    %p120 = scmp.eq.s32.totalorder %s17, 0
    %p121 = por %p119, %p120
    %s123 = sadd.s32 %s122, 1
    %p126 = scmp.eq.s32.totalorder %s11, 1
    %p127 = scmp.ne.s32.totalorder %s122, %s124
    %p128 = scmp.eq.s32.totalorder %s11, 0
    %p129 = por %p127, %p128
    %p130 = scmp.ne.s32.totalorder %s122, %s124
    %p131 = scmp.eq.s32.totalorder %s16, 1
    %p132 = por %p130, %p131
    %p133 = scmp.ne.s32.totalorder %s124, %s125
    %p134 = scmp.eq.s32.totalorder %s16, 0
    %p135 = por %p133, %p134
    %p136 = scmp.ne.s32.totalorder %s124, %s125
    %p137 = scmp.eq.s32.totalorder %s17, 1
    %p138 = por %p136, %p137
    %p140 = scmp.ne.s32.totalorder %s125, %s139
    %p141 = scmp.eq.s32.totalorder %s17, 0
    %p142 = por %p140, %p141
    %s143 = ssub.s32 %s18, %s30
    %s144 = ssub.s32 %s19, %s26
    %s145 = sor.u32 %s143, %s144
    %p146 = scmp.eq.s32.totalorder %s145, 0
    %s148 = sadd.s32 %s147, 1
    %s149 = scalar_select %p146, %s147, %s148
    %p152 = pneg %p146
    %p153 = scmp.eq.s32.totalorder %s11, 1
    %p154 = por %p152, %p153
    %p155 = scmp.ne.s32.totalorder %s147, %s150
    %p156 = scmp.eq.s32.totalorder %s11, 0
    %p157 = por %p155, %p156
    %p158 = scmp.ne.s32.totalorder %s147, %s150
    %p159 = scmp.eq.s32.totalorder %s16, 1
    %p160 = por %p158, %p159
    %p161 = scmp.ne.s32.totalorder %s150, %s151
    %p162 = scmp.eq.s32.totalorder %s16, 0
    %p163 = por %p161, %p162
    %p164 = scmp.ne.s32.totalorder %s150, %s151
    %p165 = scmp.eq.s32.totalorder %s17, 1
    %p166 = por %p164, %p165
    %p168 = scmp.ne.s32.totalorder %s151, %s167
    %p169 = scmp.eq.s32.totalorder %s17, 0
    %p170 = por %p168, %p169
    %p171 = scmp.le.s32.totalorder 1, %s11
    %p172 = scmp.lt.s32.totalorder %s11, 3
    %p173 = pnand %p171, %p172
    %p174 = pneg %p173
    // Predicated region
    $region9: #{upsample_block_forward.3} parent=5 // pred_check
      _
    $region10: #{upsample_block_forward.3} parent=5 // pred_check_branch
      %176 = sbr.rel (%p173) target = $region12
    $region11: #{upsample_block_forward.3} parent=5 // pred_region
      %s177 = ssub.s32 %s11, 1
      // Predicated region
      $region13: #{upsample_block_forward.3} parent=11 // pred_check
        %p178 = pneg %p72
      $region14: #{upsample_block_forward.3} parent=11 // pred_check_branch
        %180 = sbr.rel (%p178) target = $region16
      $region15: #{upsample_block_forward.3} parent=11 // pred_region
        _
      $region16: #{upsample_block_forward.3} parent=11 // pred_fallthru
        _
      // Predicated region
      $region17: #{upsample_block_forward.3} parent=11 // pred_check
        %p181 = pneg %p93
      $region18: #{upsample_block_forward.3} parent=11 // pred_check_branch
        %183 = sbr.rel (%p181) target = $region20
      $region19: #{upsample_block_forward.3} parent=11 // pred_region
        _
      $region20: #{upsample_block_forward.3} parent=11 // pred_fallthru
        _
      // Predicated region
      $region21: #{upsample_block_forward.3} parent=11 // pred_check
        %p184 = pneg %p114
      $region22: #{upsample_block_forward.3} parent=11 // pred_check_branch
        %186 = sbr.rel (%p184) target = $region24
      $region23: #{upsample_block_forward.3} parent=11 // pred_region
        _
      $region24: #{upsample_block_forward.3} parent=11 // pred_fallthru
        _
      // Predicated region
      $region25: #{upsample_block_forward.3} parent=11 // pred_check
        %p187 = pneg %p135
      $region26: #{upsample_block_forward.3} parent=11 // pred_check_branch
        %189 = sbr.rel (%p187) target = $region28
      $region27: #{upsample_block_forward.3} parent=11 // pred_region
        _
      $region28: #{upsample_block_forward.3} parent=11 // pred_fallthru
        _
    $region12: #{upsample_block_forward.3} parent=5 // pred_fallthru
      _
    %p190 = scmp.lt.s32.totalorder %s11, 2
    // Predicated region
    $region29: #{upsample_block_forward.3} parent=5 // pred_check
      %p191 = pneg %p190
    $region30: #{upsample_block_forward.3} parent=5 // pred_check_branch
      %193 = sbr.rel (%p191) target = $region32
    $region31: #{upsample_block_forward.3} parent=5 // pred_region
      // Predicated region
      $region33: #{upsample_block_forward.3} parent=31 // pred_check
        %p194 = pneg %p45
      $region34: #{upsample_block_forward.3} parent=31 // pred_check_branch
        %196 = sbr.rel (%p194) target = $region36
      $region35: #{upsample_block_forward.3} parent=31 // pred_region
        %s197 = smul.u32 32, %s19
        %p198 = scmp.lt.s32.totalorder %s18, 1
        %s199 = scalar_select %p198, %s18, 1
        %p200 = scmp.lt.s32.totalorder %s197, 31
        %s201 = scalar_select %p200, %s197, 31
        %s202 = smul.addr %s199, 32
        %s203 = sadd.s32 %s201, %s202
        %s204 = smul.addr %s203, 4
        %s205 = scalar_lea.vmem %s0, %s204
        %s206 = smul.u32 32, %s19
      $region36: #{upsample_block_forward.3} parent=31 // pred_fallthru
        _
    $region32: #{upsample_block_forward.3} parent=5 // pred_fallthru
      _
    %p207 = scmp.le.s32.totalorder 1, %s11
    %p208 = scmp.lt.s32.totalorder %s11, 3
    %p209 = pnand %p207, %p208
    %p210 = pneg %p209
    // Predicated region
    $region37: #{upsample_block_forward.3} parent=5 // pred_check
      _
    $region38: #{upsample_block_forward.3} parent=5 // pred_check_branch
      %212 = sbr.rel (%p209) target = $region40
    $region39: #{upsample_block_forward.3} parent=5 // pred_region
      %s213 = ssub.s32 %s11, 1
      %s214 = smul.u32 32, %s21
      %p215 = scmp.lt.s32.totalorder %s20, 1
      %s216 = scalar_select %p215, %s20, 1
      %p217 = scmp.lt.s32.totalorder %s214, 31
      %s218 = scalar_select %p217, %s214, 31
      %s219 = smul.addr %s216, 32
      %s220 = sadd.s32 %s218, %s219
      %s221 = smul.addr %s220, 4
      %s222 = scalar_lea.vmem %s0, %s221
      %p223 = pneg %p51
      %p224 = pneg %p48
      %p225 = pneg %p72
      %p226 = pneg %p69
      %p227 = pneg %p93
      %p228 = pneg %p90
      %p229 = pneg %p114
      %p230 = pneg %p111
      %p231 = pneg %p135
      %p232 = pneg %p132
      %p233 = pneg %p163
      %p234 = pneg %p160
      %s235 = smul.u32 32, %s21
      %p236 = scmp.lt.s32.totalorder %s20, 1
      %s237 = scalar_select %p236, %s20, 1
      %p238 = scmp.lt.s32.totalorder %s235, 31
      %s239 = scalar_select %p238, %s235, 31
      %s240 = smul.addr %s239, 2
      %s241 = smul.addr %s237, 64
      %s242 = sadd.s32 %s240, %s241
      %s243 = smul.addr %s242, 8
      %s244 = scalar_lea.vmem %s5, %s243
      %s245 = smul.u32 32, %s21
      %p246 = scmp.lt.s32.totalorder %s20, 1
      %s247 = scalar_select %p246, %s20, 1
      %p248 = scmp.lt.s32.totalorder %s245, 31
      %s249 = scalar_select %p248, %s245, 31
      %s250 = smul.addr %s247, 32
      %s251 = sadd.s32 %s249, %s250
      %s252 = smul.addr %s251, 4
      %s253 = scalar_lea.vmem %s0, %s252
      %s254 = smul.u32 32, %s21
      %s255 = smul.u32 32, %s21
      %p256 = scmp.lt.s32.totalorder %s20, 1
      %s257 = scalar_select %p256, %s20, 1
      %p258 = scmp.lt.s32.totalorder %s255, 31
      %s259 = scalar_select %p258, %s255, 31
      %s260 = smul.addr %s259, 2
      %s261 = smul.addr %s257, 64
      %s262 = sadd.s32 %s260, %s261
      %s263 = smul.addr %s262, 8
      %s264 = scalar_lea.vmem %s5, %s263
      %s265 = smul.u32 32, %s21
      %v267 = vld [vmem:[%s253] sm:$0xf]
      %v268 = vld [vmem:[%s253 + $0x4] sm:$0xf]
      %v269 = vld [vmem:[%s253 + $0x8] sm:$0xf]
      %v270 = vld [vmem:[%s253 + $0xc] sm:$0xf]
      %v271 = vld [vmem:[%s253 + $0x10] sm:$0xf]
      %v272 = vld [vmem:[%s253 + $0x14] sm:$0xf]
      %v273 = vld [vmem:[%s253 + $0x18] sm:$0xf]
      %v274 = vld [vmem:[%s253 + $0x1c] sm:$0xf]
      %v275 = vld [vmem:[%s253 + $0x20] sm:$0xf]
      %v276 = vld [vmem:[%s253 + $0x24] sm:$0xf]
      %v277 = vld [vmem:[%s253 + $0x28] sm:$0xf]
      %v278 = vld [vmem:[%s253 + $0x2c] sm:$0xf]
      %v279 = vld [vmem:[%s253 + $0x30] sm:$0xf]
      %v280 = vld [vmem:[%s253 + $0x34] sm:$0xf]
      %v281 = vld [vmem:[%s253 + $0x38] sm:$0xf]
      %v282 = vld [vmem:[%s253 + $0x3c] sm:$0xf]
      %v283 = vld [vmem:[%s253 + $0x40] sm:$0xf]
      %v284 = vld [vmem:[%s253 + $0x44] sm:$0xf]
      %v285 = vld [vmem:[%s253 + $0x48] sm:$0xf]
      %v286 = vld [vmem:[%s253 + $0x4c] sm:$0xf]
      %v287 = vld [vmem:[%s253 + $0x50] sm:$0xf]
      %v288 = vld [vmem:[%s253 + $0x54] sm:$0xf]
      %v289 = vld [vmem:[%s253 + $0x58] sm:$0xf]
      %v290 = vld [vmem:[%s253 + $0x5c] sm:$0xf]
      %v291 = vld [vmem:[%s253 + $0x60] sm:$0xf]
      %v292 = vld [vmem:[%s253 + $0x64] sm:$0xf]
      %v293 = vld [vmem:[%s253 + $0x68] sm:$0xf]
      %v294 = vld [vmem:[%s253 + $0x6c] sm:$0xf]
      %v295 = vld [vmem:[%s253 + $0x70] sm:$0xf]
      %v296 = vld [vmem:[%s253 + $0x74] sm:$0xf]
      %v297 = vld [vmem:[%s253 + $0x78] sm:$0xf]
      %v298 = vld [vmem:[%s253 + $0x7c] sm:$0xf]
      %v299 = vld [vmem:[%s1] sm:$0xff]
      %v300 = vld [vmem:[%s1 + $0x8] sm:$0xff]
      %v301 = vld [vmem:[%s1 + $0x10] sm:$0xff]
      %v302 = vld [vmem:[%s1 + $0x18] sm:$0xff]
      %v303 = vld [vmem:[%s1 + $0x20] sm:$0x33]
      %v336 = vunpack.c.l.b16 %v267
      %v337 = vunpack.c.l.b16 %v268
      %v338 = vunpack.c.l.b16 %v269
      %v339 = vunpack.c.l.b16 %v270
      %v340 = vunpack.c.l.b16 %v271
      %v341 = vunpack.c.l.b16 %v272
      %v342 = vunpack.c.l.b16 %v273
      %v343 = vunpack.c.l.b16 %v274
      %v344 = vunpack.c.l.b16 %v275
      %v345 = vunpack.c.l.b16 %v276
      %v346 = vunpack.c.l.b16 %v277
      %v347 = vunpack.c.l.b16 %v278
      %v348 = vunpack.c.l.b16 %v279
      %v349 = vunpack.c.l.b16 %v280
      %v350 = vunpack.c.l.b16 %v281
      %v351 = vunpack.c.l.b16 %v282
      %v352 = vunpack.c.l.b16 %v283
      %v353 = vunpack.c.l.b16 %v284
      %v354 = vunpack.c.l.b16 %v285
      %v355 = vunpack.c.l.b16 %v286
      %v356 = vunpack.c.l.b16 %v287
      %v357 = vunpack.c.l.b16 %v288
      %v358 = vunpack.c.l.b16 %v289
      %v359 = vunpack.c.l.b16 %v290
      %v360 = vunpack.c.l.b16 %v291
      %v361 = vunpack.c.l.b16 %v292
      %v362 = vunpack.c.l.b16 %v293
      %v363 = vunpack.c.l.b16 %v294
      %v364 = vunpack.c.l.b16 %v295
      %v365 = vunpack.c.l.b16 %v296
      %v366 = vunpack.c.l.b16 %v297
      %v367 = vunpack.c.l.b16 %v298
      %v368 = vpack.c.b16 %v337, %v336
      %v369 = vpack.c.b16 %v339, %v338
      %v370 = vpack.c.b16 %v341, %v340
      %v371 = vpack.c.b16 %v343, %v342
      %v372 = vpack.c.b16 %v345, %v344
      %v373 = vpack.c.b16 %v347, %v346
      %v374 = vpack.c.b16 %v349, %v348
      %v375 = vpack.c.b16 %v351, %v350
      %v376 = vpack.c.b16 %v353, %v352
      %v377 = vpack.c.b16 %v355, %v354
      %v378 = vpack.c.b16 %v357, %v356
      %v379 = vpack.c.b16 %v359, %v358
      %v380 = vpack.c.b16 %v361, %v360
      %v381 = vpack.c.b16 %v363, %v362
      %v382 = vpack.c.b16 %v365, %v364
      %v383 = vpack.c.b16 %v367, %v366
      %v389 = vunpack.c.l.b16 %v299
      %v390 = vunpack.c.h.b16 %v299
      %v391 = vunpack.c.l.b16 %v300
      %v392 = vunpack.c.h.b16 %v300
      %v393 = vunpack.c.l.b16 %v301
      %v394 = vunpack.c.h.b16 %v301
      %v395 = vunpack.c.l.b16 %v302
      %v396 = vunpack.c.h.b16 %v302
      %v397 = vunpack.c.l.b16 %v303
      %v398 = vunpack.c.h.b16 %v303
      %v399 = vpack.c.b16 %v391, %v389
      %v400 = vpack.c.b16 %v392, %v390
      %v401 = vpack.c.b16 %v395, %v393
      %v402 = vpack.c.b16 %v396, %v394
      %v403 = vpack.c.b16 %v397, %v397
      %v404 = vpack.c.b16 %v398, %v398
      %vm409 = vcmask 293888
      %v411 = vsel %vm409, %v368, 0
      %v414 = vsel %vm409, %v369, 0
      %v417 = vsel %vm409, %v370, 0
      %v420 = vsel %vm409, %v371, 0
      %v423 = vsel %vm409, %v372, 0
      %v426 = vsel %vm409, %v373, 0
      %v429 = vsel %vm409, %v374, 0
      %v432 = vsel %vm409, %v375, 0
      %v435 = vsel %vm409, %v376, 0
      %v438 = vsel %vm409, %v377, 0
      %v441 = vsel %vm409, %v378, 0
      %v444 = vsel %vm409, %v379, 0
      %v447 = vsel %vm409, %v380, 0
      %v450 = vsel %vm409, %v381, 0
      %v453 = vsel %vm409, %v382, 0
      %v456 = vsel %vm409, %v383, 0
      %vm458 = vcmask 1041408
      %v460 = vsel %vm458, %v403, 0
      %v463 = vsel %vm458, %v404, 0
      %465 = vmatprep.subr.bf16.mxu0 0
      %466 = vmatpush1.bf16.msra.mxu0 0
      %467 = vmatprep.subr.bf16.mxu0 0
      %468 = vmatpush1.bf16.msra.mxu0 0
      %469 = vmatprep.subr.bf16.mxu0 0
      %470 = vmatpush1.bf16.msra.mxu0 0
      %471 = vmatprep.subr.bf16.mxu0 0
      %472 = vmatpush1.bf16.msra.mxu0 0
      %473 = vmatprep.subr.bf16.mxu0 0
      %474 = vmatpush1.bf16.msra.mxu0 0
      %475 = vmatprep.subr.bf16.mxu0 %v463
      %476 = vmatpush1.bf16.msra.mxu0 %v460
      %477 = vmatprep.subr.bf16.mxu0 %v402
      %478 = vmatpush1.bf16.msra.mxu0 %v401
      %479 = vmatprep.subr.bf16.mxu0 %v400
      %480 = vmatpush1.bf16.msra.mxu0 %v399
      %481 = vmatprep.subr.bf16.mxu0 0
      %482 = vmatpush2.bf16.msra.mxu0 0
      %483 = vmatprep.subr.bf16.mxu0 0
      %484 = vmatpush2.bf16.msra.mxu0 0
      %485 = vmatprep.subr.bf16.mxu0 0
      %486 = vmatpush2.bf16.msra.mxu0 0
      %487 = vmatprep.subr.bf16.mxu0 0
      %488 = vmatpush2.bf16.msra.mxu0 0
      %489 = vmatprep.subr.bf16.mxu0 0
      %490 = vmatpush2.bf16.msra.mxu0 0
      %491 = vmatprep.subr.bf16.mxu0 0
      %492 = vmatpush2.bf16.msra.mxu0 0
      %493 = vmatprep.subr.bf16.mxu0 0
      %494 = vmatpush2.bf16.msra.mxu0 0
      %495 = vmatprep.subr.bf16.mxu0 0
      %496 = vmatpush2.bf16.msra.mxu0 0
      %497 = vmatprep.mubr.bf16.mxu0 0
      %498 = vmatmul.mubr.bf16.gmra.mxu0 %v411
      %v499 = vpop.f32.mrf.mxu0
      %v500 = vadd.f32 0.0, %v499
      %v501 = vpop.f32.mrf.mxu0
      %v502 = vadd.f32 0.0, %v501
      %v503 = vpop.f32.mrf.mxu0
      %v504 = vadd.f32 0.0, %v503
      %v505 = vpop.f32.mrf.mxu0
      %v506 = vadd.f32 0.0, %v505
      %507 = vmatprep.mubr.bf16.mxu0 0
      %508 = vmatmul.mubr.bf16.gmra.mxu0 %v414
      %v509 = vpop.f32.mrf.mxu0
      %v510 = vadd.f32 0.0, %v509
      %v511 = vpop.f32.mrf.mxu0
      %v512 = vadd.f32 0.0, %v511
      %v513 = vpop.f32.mrf.mxu0
      %v514 = vadd.f32 0.0, %v513
      %v515 = vpop.f32.mrf.mxu0
      %v516 = vadd.f32 0.0, %v515
      %517 = vmatprep.mubr.bf16.mxu0 0
      %518 = vmatmul.mubr.bf16.gmra.mxu0 %v417
      %v519 = vpop.f32.mrf.mxu0
      %v520 = vadd.f32 0.0, %v519
      %v521 = vpop.f32.mrf.mxu0
      %v522 = vadd.f32 0.0, %v521
      %v523 = vpop.f32.mrf.mxu0
      %v524 = vadd.f32 0.0, %v523
      %v525 = vpop.f32.mrf.mxu0
      %v526 = vadd.f32 0.0, %v525
      %527 = vmatprep.mubr.bf16.mxu0 0
      %528 = vmatmul.mubr.bf16.gmra.mxu0 %v420
      %v529 = vpop.f32.mrf.mxu0
      %v530 = vadd.f32 0.0, %v529
      %v531 = vpop.f32.mrf.mxu0
      %v532 = vadd.f32 0.0, %v531
      %v533 = vpop.f32.mrf.mxu0
      %v534 = vadd.f32 0.0, %v533
      %v535 = vpop.f32.mrf.mxu0
      %v536 = vadd.f32 0.0, %v535
      %537 = vmatprep.mubr.bf16.mxu0 0
      %538 = vmatmul.mubr.bf16.gmra.mxu0 %v423
      %v539 = vpop.f32.mrf.mxu0
      %v540 = vadd.f32 0.0, %v539
      %v541 = vpop.f32.mrf.mxu0
      %v542 = vadd.f32 0.0, %v541
      %v543 = vpop.f32.mrf.mxu0
      %v544 = vadd.f32 0.0, %v543
      %v545 = vpop.f32.mrf.mxu0
      %v546 = vadd.f32 0.0, %v545
      %547 = vmatprep.mubr.bf16.mxu0 0
      %548 = vmatmul.mubr.bf16.gmra.mxu0 %v426
      %v549 = vpop.f32.mrf.mxu0
      %v550 = vadd.f32 0.0, %v549
      %v551 = vpop.f32.mrf.mxu0
      %v552 = vadd.f32 0.0, %v551
      %v553 = vpop.f32.mrf.mxu0
      %v554 = vadd.f32 0.0, %v553
      %v555 = vpop.f32.mrf.mxu0
      %v556 = vadd.f32 0.0, %v555
      %557 = vmatprep.mubr.bf16.mxu0 0
      %558 = vmatmul.mubr.bf16.gmra.mxu0 %v429
      %v559 = vpop.f32.mrf.mxu0
      %v560 = vadd.f32 0.0, %v559
      %v561 = vpop.f32.mrf.mxu0
      %v562 = vadd.f32 0.0, %v561
      %v563 = vpop.f32.mrf.mxu0
      %v564 = vadd.f32 0.0, %v563
      %v565 = vpop.f32.mrf.mxu0
      %v566 = vadd.f32 0.0, %v565
      %567 = vmatprep.mubr.bf16.mxu0 0
      %568 = vmatmul.mubr.bf16.gmra.mxu0 %v432
      %v569 = vpop.f32.mrf.mxu0
      %v570 = vadd.f32 0.0, %v569
      %v571 = vpop.f32.mrf.mxu0
      %v572 = vadd.f32 0.0, %v571
      %v573 = vpop.f32.mrf.mxu0
      %v574 = vadd.f32 0.0, %v573
      %v575 = vpop.f32.mrf.mxu0
      %v576 = vadd.f32 0.0, %v575
      %577 = vmatprep.mubr.bf16.mxu0 0
      %578 = vmatmul.mubr.bf16.gmra.mxu0 %v435
      %v579 = vpop.f32.mrf.mxu0
      %v580 = vadd.f32 0.0, %v579
      %v581 = vpop.f32.mrf.mxu0
      %v582 = vadd.f32 0.0, %v581
      %v583 = vpop.f32.mrf.mxu0
      %v584 = vadd.f32 0.0, %v583
      %v585 = vpop.f32.mrf.mxu0
      %v586 = vadd.f32 0.0, %v585
      %587 = vmatprep.mubr.bf16.mxu0 0
      %588 = vmatmul.mubr.bf16.gmra.mxu0 %v438
      %v589 = vpop.f32.mrf.mxu0
      %v590 = vadd.f32 0.0, %v589
      %v591 = vpop.f32.mrf.mxu0
      %v592 = vadd.f32 0.0, %v591
      %v593 = vpop.f32.mrf.mxu0
      %v594 = vadd.f32 0.0, %v593
      %v595 = vpop.f32.mrf.mxu0
      %v596 = vadd.f32 0.0, %v595
      %597 = vmatprep.mubr.bf16.mxu0 0
      %598 = vmatmul.mubr.bf16.gmra.mxu0 %v441
      %v599 = vpop.f32.mrf.mxu0
      %v600 = vadd.f32 0.0, %v599
      %v601 = vpop.f32.mrf.mxu0
      %v602 = vadd.f32 0.0, %v601
      %v603 = vpop.f32.mrf.mxu0
      %v604 = vadd.f32 0.0, %v603
      %v605 = vpop.f32.mrf.mxu0
      %v606 = vadd.f32 0.0, %v605
      %607 = vmatprep.mubr.bf16.mxu0 0
      %608 = vmatmul.mubr.bf16.gmra.mxu0 %v444
      %v609 = vpop.f32.mrf.mxu0
      %v610 = vadd.f32 0.0, %v609
      %v611 = vpop.f32.mrf.mxu0
      %v612 = vadd.f32 0.0, %v611
      %v613 = vpop.f32.mrf.mxu0
      %v614 = vadd.f32 0.0, %v613
      %v615 = vpop.f32.mrf.mxu0
      %v616 = vadd.f32 0.0, %v615
      %617 = vmatprep.mubr.bf16.mxu0 0
      %618 = vmatmul.mubr.bf16.gmra.mxu0 %v447
      %v619 = vpop.f32.mrf.mxu0
      %v620 = vadd.f32 0.0, %v619
      %v621 = vpop.f32.mrf.mxu0
      %v622 = vadd.f32 0.0, %v621
      %v623 = vpop.f32.mrf.mxu0
      %v624 = vadd.f32 0.0, %v623
      %v625 = vpop.f32.mrf.mxu0
      %v626 = vadd.f32 0.0, %v625
      %627 = vmatprep.mubr.bf16.mxu0 0
      %628 = vmatmul.mubr.bf16.gmra.mxu0 %v450
      %v629 = vpop.f32.mrf.mxu0
      %v630 = vadd.f32 0.0, %v629
      %v631 = vpop.f32.mrf.mxu0
      %v632 = vadd.f32 0.0, %v631
      %v633 = vpop.f32.mrf.mxu0
      %v634 = vadd.f32 0.0, %v633
      %v635 = vpop.f32.mrf.mxu0
      %v636 = vadd.f32 0.0, %v635
      %637 = vmatprep.mubr.bf16.mxu0 0
      %638 = vmatmul.mubr.bf16.gmra.mxu0 %v453
      %v639 = vpop.f32.mrf.mxu0
      %v640 = vadd.f32 0.0, %v639
      %v641 = vpop.f32.mrf.mxu0
      %v642 = vadd.f32 0.0, %v641
      %v643 = vpop.f32.mrf.mxu0
      %v644 = vadd.f32 0.0, %v643
      %v645 = vpop.f32.mrf.mxu0
      %v646 = vadd.f32 0.0, %v645
      %647 = vmatprep.mubr.bf16.mxu0 0
      %648 = vmatmul.mubr.bf16.gmra.mxu0 %v456
      %v649 = vpop.f32.mrf.mxu0
      %v650 = vadd.f32 0.0, %v649
      %v651 = vpop.f32.mrf.mxu0
      %v652 = vadd.f32 0.0, %v651
      %v653 = vpop.f32.mrf.mxu0
      %v654 = vadd.f32 0.0, %v653
      %v655 = vpop.f32.mrf.mxu0
      %v656 = vadd.f32 0.0, %v655
      %657 = vdwg.mxu0
      %v658 = vld [vmem:[%s2] sm:$0x3]
      %v660 = vlaneseq
      %v661 = vshrl.u32 %v660, 7
      %v662 = vsub.s32 0, %v661
      %v663 = vrot.slane %v658, %v662
      %v664 = vlaneseq
      %v665 = vshrl.u32 %v664, 7
      %v666 = vsub.s32 1, %v665
      %v667 = vrot.slane %v658, %v666
      %v670 = vmul.f32 %v500, %v663
      %v671 = vmul.f32 %v502, %v667
      %v672 = vmul.f32 %v504, %v663
      %v673 = vmul.f32 %v506, %v667
      %v674 = vmul.f32 %v510, %v663
      %v675 = vmul.f32 %v512, %v667
      %v676 = vmul.f32 %v514, %v663
      %v677 = vmul.f32 %v516, %v667
      %v678 = vmul.f32 %v520, %v663
      %v679 = vmul.f32 %v522, %v667
      %v680 = vmul.f32 %v524, %v663
      %v681 = vmul.f32 %v526, %v667
      %v682 = vmul.f32 %v530, %v663
      %v683 = vmul.f32 %v532, %v667
      %v684 = vmul.f32 %v534, %v663
      %v685 = vmul.f32 %v536, %v667
      %v686 = vmul.f32 %v540, %v663
      %v687 = vmul.f32 %v542, %v667
      %v688 = vmul.f32 %v544, %v663
      %v689 = vmul.f32 %v546, %v667
      %v690 = vmul.f32 %v550, %v663
      %v691 = vmul.f32 %v552, %v667
      %v692 = vmul.f32 %v554, %v663
      %v693 = vmul.f32 %v556, %v667
      %v694 = vmul.f32 %v560, %v663
      %v695 = vmul.f32 %v562, %v667
      %v696 = vmul.f32 %v564, %v663
      %v697 = vmul.f32 %v566, %v667
      %v698 = vmul.f32 %v570, %v663
      %v699 = vmul.f32 %v572, %v667
      %v700 = vmul.f32 %v574, %v663
      %v701 = vmul.f32 %v576, %v667
      %v702 = vmul.f32 %v580, %v663
      %v703 = vmul.f32 %v582, %v667
      %v704 = vmul.f32 %v584, %v663
      %v705 = vmul.f32 %v586, %v667
      %v706 = vmul.f32 %v590, %v663
      %v707 = vmul.f32 %v592, %v667
      %v708 = vmul.f32 %v594, %v663
      %v709 = vmul.f32 %v596, %v667
      %v710 = vmul.f32 %v600, %v663
      %v711 = vmul.f32 %v602, %v667
      %v712 = vmul.f32 %v604, %v663
      %v713 = vmul.f32 %v606, %v667
      %v714 = vmul.f32 %v610, %v663
      %v715 = vmul.f32 %v612, %v667
      %v716 = vmul.f32 %v614, %v663
      %v717 = vmul.f32 %v616, %v667
      %v718 = vmul.f32 %v620, %v663
      %v719 = vmul.f32 %v622, %v667
      %v720 = vmul.f32 %v624, %v663
      %v721 = vmul.f32 %v626, %v667
      %v722 = vmul.f32 %v630, %v663
      %v723 = vmul.f32 %v632, %v667
      %v724 = vmul.f32 %v634, %v663
      %v725 = vmul.f32 %v636, %v667
      %v726 = vmul.f32 %v640, %v663
      %v727 = vmul.f32 %v642, %v667
      %v728 = vmul.f32 %v644, %v663
      %v729 = vmul.f32 %v646, %v667
      %v730 = vmul.f32 %v650, %v663
      %v731 = vmul.f32 %v652, %v667
      %v732 = vmul.f32 %v654, %v663
      %v733 = vmul.f32 %v656, %v667
      %v734 = vld [vmem:[%s3] sm:$0x3]
      %v736 = vlaneseq
      %v737 = vshrl.u32 %v736, 7
      %v738 = vsub.s32 0, %v737
      %v739 = vrot.slane %v734, %v738
      %v740 = vlaneseq
      %v741 = vshrl.u32 %v740, 7
      %v742 = vsub.s32 1, %v741
      %v743 = vrot.slane %v734, %v742
      %v746 = vadd.f32 %v670, %v739
      %v747 = vadd.f32 %v671, %v743
      %v748 = vadd.f32 %v672, %v739
      %v749 = vadd.f32 %v673, %v743
      %v750 = vadd.f32 %v674, %v739
      %v751 = vadd.f32 %v675, %v743
      %v752 = vadd.f32 %v676, %v739
      %v753 = vadd.f32 %v677, %v743
      %v754 = vadd.f32 %v678, %v739
      %v755 = vadd.f32 %v679, %v743
      %v756 = vadd.f32 %v680, %v739
      %v757 = vadd.f32 %v681, %v743
      %v758 = vadd.f32 %v682, %v739
      %v759 = vadd.f32 %v683, %v743
      %v760 = vadd.f32 %v684, %v739
      %v761 = vadd.f32 %v685, %v743
      %v762 = vadd.f32 %v686, %v739
      %v763 = vadd.f32 %v687, %v743
      %v764 = vadd.f32 %v688, %v739
      %v765 = vadd.f32 %v689, %v743
      %v766 = vadd.f32 %v690, %v739
      %v767 = vadd.f32 %v691, %v743
      %v768 = vadd.f32 %v692, %v739
      %v769 = vadd.f32 %v693, %v743
      %v770 = vadd.f32 %v694, %v739
      %v771 = vadd.f32 %v695, %v743
      %v772 = vadd.f32 %v696, %v739
      %v773 = vadd.f32 %v697, %v743
      %v774 = vadd.f32 %v698, %v739
      %v775 = vadd.f32 %v699, %v743
      %v776 = vadd.f32 %v700, %v739
      %v777 = vadd.f32 %v701, %v743
      %v778 = vadd.f32 %v702, %v739
      %v779 = vadd.f32 %v703, %v743
      %v780 = vadd.f32 %v704, %v739
      %v781 = vadd.f32 %v705, %v743
      %v782 = vadd.f32 %v706, %v739
      %v783 = vadd.f32 %v707, %v743
      %v784 = vadd.f32 %v708, %v739
      %v785 = vadd.f32 %v709, %v743
      %v786 = vadd.f32 %v710, %v739
      %v787 = vadd.f32 %v711, %v743
      %v788 = vadd.f32 %v712, %v739
      %v789 = vadd.f32 %v713, %v743
      %v790 = vadd.f32 %v714, %v739
      %v791 = vadd.f32 %v715, %v743
      %v792 = vadd.f32 %v716, %v739
      %v793 = vadd.f32 %v717, %v743
      %v794 = vadd.f32 %v718, %v739
      %v795 = vadd.f32 %v719, %v743
      %v796 = vadd.f32 %v720, %v739
      %v797 = vadd.f32 %v721, %v743
      %v798 = vadd.f32 %v722, %v739
      %v799 = vadd.f32 %v723, %v743
      %v800 = vadd.f32 %v724, %v739
      %v801 = vadd.f32 %v725, %v743
      %v802 = vadd.f32 %v726, %v739
      %v803 = vadd.f32 %v727, %v743
      %v804 = vadd.f32 %v728, %v739
      %v805 = vadd.f32 %v729, %v743
      %v806 = vadd.f32 %v730, %v739
      %v807 = vadd.f32 %v731, %v743
      %v808 = vadd.f32 %v732, %v739
      %v809 = vadd.f32 %v733, %v743
      %vm810 = vcmp.ge.f32.partialorder %v746, 0.0
      %vm811 = vcmp.ge.f32.partialorder %v747, 0.0
      %vm812 = vcmp.ge.f32.partialorder %v748, 0.0
      %vm813 = vcmp.ge.f32.partialorder %v749, 0.0
      %vm814 = vcmp.ge.f32.partialorder %v750, 0.0
      %vm815 = vcmp.ge.f32.partialorder %v751, 0.0
      %vm816 = vcmp.ge.f32.partialorder %v752, 0.0
      %vm817 = vcmp.ge.f32.partialorder %v753, 0.0
      %vm818 = vcmp.ge.f32.partialorder %v754, 0.0
      %vm819 = vcmp.ge.f32.partialorder %v755, 0.0
      %vm820 = vcmp.ge.f32.partialorder %v756, 0.0
      %vm821 = vcmp.ge.f32.partialorder %v757, 0.0
      %vm822 = vcmp.ge.f32.partialorder %v758, 0.0
      %vm823 = vcmp.ge.f32.partialorder %v759, 0.0
      %vm824 = vcmp.ge.f32.partialorder %v760, 0.0
      %vm825 = vcmp.ge.f32.partialorder %v761, 0.0
      %vm826 = vcmp.ge.f32.partialorder %v762, 0.0
      %vm827 = vcmp.ge.f32.partialorder %v763, 0.0
      %vm828 = vcmp.ge.f32.partialorder %v764, 0.0
      %vm829 = vcmp.ge.f32.partialorder %v765, 0.0
      %vm830 = vcmp.ge.f32.partialorder %v766, 0.0
      %vm831 = vcmp.ge.f32.partialorder %v767, 0.0
      %vm832 = vcmp.ge.f32.partialorder %v768, 0.0
      %vm833 = vcmp.ge.f32.partialorder %v769, 0.0
      %vm834 = vcmp.ge.f32.partialorder %v770, 0.0
      %vm835 = vcmp.ge.f32.partialorder %v771, 0.0
      %vm836 = vcmp.ge.f32.partialorder %v772, 0.0
      %vm837 = vcmp.ge.f32.partialorder %v773, 0.0
      %vm838 = vcmp.ge.f32.partialorder %v774, 0.0
      %vm839 = vcmp.ge.f32.partialorder %v775, 0.0
      %vm840 = vcmp.ge.f32.partialorder %v776, 0.0
      %vm841 = vcmp.ge.f32.partialorder %v777, 0.0
      %vm842 = vcmp.ge.f32.partialorder %v778, 0.0
      %vm843 = vcmp.ge.f32.partialorder %v779, 0.0
      %vm844 = vcmp.ge.f32.partialorder %v780, 0.0
      %vm845 = vcmp.ge.f32.partialorder %v781, 0.0
      %vm846 = vcmp.ge.f32.partialorder %v782, 0.0
      %vm847 = vcmp.ge.f32.partialorder %v783, 0.0
      %vm848 = vcmp.ge.f32.partialorder %v784, 0.0
      %vm849 = vcmp.ge.f32.partialorder %v785, 0.0
      %vm850 = vcmp.ge.f32.partialorder %v786, 0.0
      %vm851 = vcmp.ge.f32.partialorder %v787, 0.0
      %vm852 = vcmp.ge.f32.partialorder %v788, 0.0
      %vm853 = vcmp.ge.f32.partialorder %v789, 0.0
      %vm854 = vcmp.ge.f32.partialorder %v790, 0.0
      %vm855 = vcmp.ge.f32.partialorder %v791, 0.0
      %vm856 = vcmp.ge.f32.partialorder %v792, 0.0
      %vm857 = vcmp.ge.f32.partialorder %v793, 0.0
      %vm858 = vcmp.ge.f32.partialorder %v794, 0.0
      %vm859 = vcmp.ge.f32.partialorder %v795, 0.0
      %vm860 = vcmp.ge.f32.partialorder %v796, 0.0
      %vm861 = vcmp.ge.f32.partialorder %v797, 0.0
      %vm862 = vcmp.ge.f32.partialorder %v798, 0.0
      %vm863 = vcmp.ge.f32.partialorder %v799, 0.0
      %vm864 = vcmp.ge.f32.partialorder %v800, 0.0
      %vm865 = vcmp.ge.f32.partialorder %v801, 0.0
      %vm866 = vcmp.ge.f32.partialorder %v802, 0.0
      %vm867 = vcmp.ge.f32.partialorder %v803, 0.0
      %vm868 = vcmp.ge.f32.partialorder %v804, 0.0
      %vm869 = vcmp.ge.f32.partialorder %v805, 0.0
      %vm870 = vcmp.ge.f32.partialorder %v806, 0.0
      %vm871 = vcmp.ge.f32.partialorder %v807, 0.0
      %vm872 = vcmp.ge.f32.partialorder %v808, 0.0
      %vm873 = vcmp.ge.f32.partialorder %v809, 0.0
      %v874 = vld [vmem:[%s4] sm:$0x3]
      %v876 = vlaneseq
      %v877 = vshrl.u32 %v876, 7
      %v878 = vsub.s32 0, %v877
      %v879 = vrot.slane %v874, %v878
      %v880 = vlaneseq
      %v881 = vshrl.u32 %v880, 7
      %v882 = vsub.s32 1, %v881
      %v883 = vrot.slane %v874, %v882
      %v886 = vmul.f32 %v879, %v746
      %v887 = vmul.f32 %v883, %v747
      %v888 = vmul.f32 %v879, %v748
      %v889 = vmul.f32 %v883, %v749
      %v890 = vmul.f32 %v879, %v750
      %v891 = vmul.f32 %v883, %v751
      %v892 = vmul.f32 %v879, %v752
      %v893 = vmul.f32 %v883, %v753
      %v894 = vmul.f32 %v879, %v754
      %v895 = vmul.f32 %v883, %v755
      %v896 = vmul.f32 %v879, %v756
      %v897 = vmul.f32 %v883, %v757
      %v898 = vmul.f32 %v879, %v758
      %v899 = vmul.f32 %v883, %v759
      %v900 = vmul.f32 %v879, %v760
      %v901 = vmul.f32 %v883, %v761
      %v902 = vmul.f32 %v879, %v762
      %v903 = vmul.f32 %v883, %v763
      %v904 = vmul.f32 %v879, %v764
      %v905 = vmul.f32 %v883, %v765
      %v906 = vmul.f32 %v879, %v766
      %v907 = vmul.f32 %v883, %v767
      %v908 = vmul.f32 %v879, %v768
      %v909 = vmul.f32 %v883, %v769
      %v910 = vmul.f32 %v879, %v770
      %v911 = vmul.f32 %v883, %v771
      %v912 = vmul.f32 %v879, %v772
      %v913 = vmul.f32 %v883, %v773
      %v914 = vmul.f32 %v879, %v774
      %v915 = vmul.f32 %v883, %v775
      %v916 = vmul.f32 %v879, %v776
      %v917 = vmul.f32 %v883, %v777
      %v918 = vmul.f32 %v879, %v778
      %v919 = vmul.f32 %v883, %v779
      %v920 = vmul.f32 %v879, %v780
      %v921 = vmul.f32 %v883, %v781
      %v922 = vmul.f32 %v879, %v782
      %v923 = vmul.f32 %v883, %v783
      %v924 = vmul.f32 %v879, %v784
      %v925 = vmul.f32 %v883, %v785
      %v926 = vmul.f32 %v879, %v786
      %v927 = vmul.f32 %v883, %v787
      %v928 = vmul.f32 %v879, %v788
      %v929 = vmul.f32 %v883, %v789
      %v930 = vmul.f32 %v879, %v790
      %v931 = vmul.f32 %v883, %v791
      %v932 = vmul.f32 %v879, %v792
      %v933 = vmul.f32 %v883, %v793
      %v934 = vmul.f32 %v879, %v794
      %v935 = vmul.f32 %v883, %v795
      %v936 = vmul.f32 %v879, %v796
      %v937 = vmul.f32 %v883, %v797
      %v938 = vmul.f32 %v879, %v798
      %v939 = vmul.f32 %v883, %v799
      %v940 = vmul.f32 %v879, %v800
      %v941 = vmul.f32 %v883, %v801
      %v942 = vmul.f32 %v879, %v802
      %v943 = vmul.f32 %v883, %v803
      %v944 = vmul.f32 %v879, %v804
      %v945 = vmul.f32 %v883, %v805
      %v946 = vmul.f32 %v879, %v806
      %v947 = vmul.f32 %v883, %v807
      %v948 = vmul.f32 %v879, %v808
      %v949 = vmul.f32 %v883, %v809
      %v950 = vsel %vm810, %v746, %v886
      %v951 = vsel %vm811, %v747, %v887
      %v952 = vsel %vm812, %v748, %v888
      %v953 = vsel %vm813, %v749, %v889
      %v954 = vsel %vm814, %v750, %v890
      %v955 = vsel %vm815, %v751, %v891
      %v956 = vsel %vm816, %v752, %v892
      %v957 = vsel %vm817, %v753, %v893
      %v958 = vsel %vm818, %v754, %v894
      %v959 = vsel %vm819, %v755, %v895
      %v960 = vsel %vm820, %v756, %v896
      %v961 = vsel %vm821, %v757, %v897
      %v962 = vsel %vm822, %v758, %v898
      %v963 = vsel %vm823, %v759, %v899
      %v964 = vsel %vm824, %v760, %v900
      %v965 = vsel %vm825, %v761, %v901
      %v966 = vsel %vm826, %v762, %v902
      %v967 = vsel %vm827, %v763, %v903
      %v968 = vsel %vm828, %v764, %v904
      %v969 = vsel %vm829, %v765, %v905
      %v970 = vsel %vm830, %v766, %v906
      %v971 = vsel %vm831, %v767, %v907
      %v972 = vsel %vm832, %v768, %v908
      %v973 = vsel %vm833, %v769, %v909
      %v974 = vsel %vm834, %v770, %v910
      %v975 = vsel %vm835, %v771, %v911
      %v976 = vsel %vm836, %v772, %v912
      %v977 = vsel %vm837, %v773, %v913
      %v978 = vsel %vm838, %v774, %v914
      %v979 = vsel %vm839, %v775, %v915
      %v980 = vsel %vm840, %v776, %v916
      %v981 = vsel %vm841, %v777, %v917
      %v982 = vsel %vm842, %v778, %v918
      %v983 = vsel %vm843, %v779, %v919
      %v984 = vsel %vm844, %v780, %v920
      %v985 = vsel %vm845, %v781, %v921
      %v986 = vsel %vm846, %v782, %v922
      %v987 = vsel %vm847, %v783, %v923
      %v988 = vsel %vm848, %v784, %v924
      %v989 = vsel %vm849, %v785, %v925
      %v990 = vsel %vm850, %v786, %v926
      %v991 = vsel %vm851, %v787, %v927
      %v992 = vsel %vm852, %v788, %v928
      %v993 = vsel %vm853, %v789, %v929
      %v994 = vsel %vm854, %v790, %v930
      %v995 = vsel %vm855, %v791, %v931
      %v996 = vsel %vm856, %v792, %v932
      %v997 = vsel %vm857, %v793, %v933
      %v998 = vsel %vm858, %v794, %v934
      %v999 = vsel %vm859, %v795, %v935
      %v1000 = vsel %vm860, %v796, %v936
      %v1001 = vsel %vm861, %v797, %v937
      %v1002 = vsel %vm862, %v798, %v938
      %v1003 = vsel %vm863, %v799, %v939
      %v1004 = vsel %vm864, %v800, %v940
      %v1005 = vsel %vm865, %v801, %v941
      %v1006 = vsel %vm866, %v802, %v942
      %v1007 = vsel %vm867, %v803, %v943
      %v1008 = vsel %vm868, %v804, %v944
      %v1009 = vsel %vm869, %v805, %v945
      %v1010 = vsel %vm870, %v806, %v946
      %v1011 = vsel %vm871, %v807, %v947
      %v1012 = vsel %vm872, %v808, %v948
      %v1013 = vsel %vm873, %v809, %v949
      %1014 = vst [vmem:[%s264] sm:$0xff] %v950
      %1015 = vst [vmem:[%s264 + $0x8] sm:$0xff] %v951
      %1016 = vst [vmem:[%s264 + $0x10] sm:$0xff] %v952
      %1017 = vst [vmem:[%s264 + $0x18] sm:$0xff] %v953
      %1018 = vst [vmem:[%s264 + $0x20] sm:$0xff] %v954
      %1019 = vst [vmem:[%s264 + $0x28] sm:$0xff] %v955
      %1020 = vst [vmem:[%s264 + $0x30] sm:$0xff] %v956
      %1021 = vst [vmem:[%s264 + $0x38] sm:$0xff] %v957
      %1022 = vst [vmem:[%s264 + $0x40] sm:$0xff] %v958
      %1023 = vst [vmem:[%s264 + $0x48] sm:$0xff] %v959
      %1024 = vst [vmem:[%s264 + $0x50] sm:$0xff] %v960
      %1025 = vst [vmem:[%s264 + $0x58] sm:$0xff] %v961
      %1026 = vst [vmem:[%s264 + $0x60] sm:$0xff] %v962
      %1027 = vst [vmem:[%s264 + $0x68] sm:$0xff] %v963
      %1028 = vst [vmem:[%s264 + $0x70] sm:$0xff] %v964
      %1029 = vst [vmem:[%s264 + $0x78] sm:$0xff] %v965
      %1030 = vst [vmem:[%s264 + $0x80] sm:$0xff] %v966
      %1031 = vst [vmem:[%s264 + $0x88] sm:$0xff] %v967
      %1032 = vst [vmem:[%s264 + $0x90] sm:$0xff] %v968
      %1033 = vst [vmem:[%s264 + $0x98] sm:$0xff] %v969
      %1034 = vst [vmem:[%s264 + $0xa0] sm:$0xff] %v970
      %1035 = vst [vmem:[%s264 + $0xa8] sm:$0xff] %v971
      %1036 = vst [vmem:[%s264 + $0xb0] sm:$0xff] %v972
      %1037 = vst [vmem:[%s264 + $0xb8] sm:$0xff] %v973
      %1038 = vst [vmem:[%s264 + $0xc0] sm:$0xff] %v974
      %1039 = vst [vmem:[%s264 + $0xc8] sm:$0xff] %v975
      %1040 = vst [vmem:[%s264 + $0xd0] sm:$0xff] %v976
      %1041 = vst [vmem:[%s264 + $0xd8] sm:$0xff] %v977
      %1042 = vst [vmem:[%s264 + $0xe0] sm:$0xff] %v978
      %1043 = vst [vmem:[%s264 + $0xe8] sm:$0xff] %v979
      %1044 = vst [vmem:[%s264 + $0xf0] sm:$0xff] %v980
      %1045 = vst [vmem:[%s264 + $0xf8] sm:$0xff] %v981
      %1046 = vst [vmem:[%s264 + $0x100] sm:$0xff] %v982
      %1047 = vst [vmem:[%s264 + $0x108] sm:$0xff] %v983
      %1048 = vst [vmem:[%s264 + $0x110] sm:$0xff] %v984
      %1049 = vst [vmem:[%s264 + $0x118] sm:$0xff] %v985
      %1050 = vst [vmem:[%s264 + $0x120] sm:$0xff] %v986
      %1051 = vst [vmem:[%s264 + $0x128] sm:$0xff] %v987
      %1052 = vst [vmem:[%s264 + $0x130] sm:$0xff] %v988
      %1053 = vst [vmem:[%s264 + $0x138] sm:$0xff] %v989
      %1054 = vst [vmem:[%s264 + $0x140] sm:$0xff] %v990
      %1055 = vst [vmem:[%s264 + $0x148] sm:$0xff] %v991
      %1056 = vst [vmem:[%s264 + $0x150] sm:$0xff] %v992
      %1057 = vst [vmem:[%s264 + $0x158] sm:$0xff] %v993
      %1058 = vst [vmem:[%s264 + $0x160] sm:$0xff] %v994
      %1059 = vst [vmem:[%s264 + $0x168] sm:$0xff] %v995
      %1060 = vst [vmem:[%s264 + $0x170] sm:$0xff] %v996
      %1061 = vst [vmem:[%s264 + $0x178] sm:$0xff] %v997
      %1062 = vst [vmem:[%s264 + $0x180] sm:$0xff] %v998
      %1063 = vst [vmem:[%s264 + $0x188] sm:$0xff] %v999
      %1064 = vst [vmem:[%s264 + $0x190] sm:$0xff] %v1000
      %1065 = vst [vmem:[%s264 + $0x198] sm:$0xff] %v1001
      %1066 = vst [vmem:[%s264 + $0x1a0] sm:$0xff] %v1002
      %1067 = vst [vmem:[%s264 + $0x1a8] sm:$0xff] %v1003
      %1068 = vst [vmem:[%s264 + $0x1b0] sm:$0xff] %v1004
      %1069 = vst [vmem:[%s264 + $0x1b8] sm:$0xff] %v1005
      %1070 = vst [vmem:[%s264 + $0x1c0] sm:$0xff] %v1006
      %1071 = vst [vmem:[%s264 + $0x1c8] sm:$0xff] %v1007
      %1072 = vst [vmem:[%s264 + $0x1d0] sm:$0xff] %v1008
      %1073 = vst [vmem:[%s264 + $0x1d8] sm:$0xff] %v1009
      %1074 = vst [vmem:[%s264 + $0x1e0] sm:$0xff] %v1010
      %1075 = vst [vmem:[%s264 + $0x1e8] sm:$0xff] %v1011
      %1076 = vst [vmem:[%s264 + $0x1f0] sm:$0xff] %v1012
      %1077 = vst [vmem:[%s264 + $0x1f8] sm:$0xff] %v1013
      %s1078 = smul.u32 32, %s21
      %p1079 = scmp.lt.s32.totalorder %s20, 1
      %s1080 = scalar_select %p1079, %s20, 1
      %p1081 = scmp.lt.s32.totalorder %s1078, 31
      %s1082 = scalar_select %p1081, %s1078, 31
      %s1083 = smul.addr %s1082, 2
      %s1084 = smul.addr %s1080, 64
      %s1085 = sadd.s32 %s1083, %s1084
      %s1086 = smul.addr %s1085, 8
      %s1087 = scalar_lea.vmem %s5, %s1086
      // Predicated region
      $region41: #{upsample_block_forward.3} parent=39 // pred_check
        %p1088 = pneg %p160
      $region42: #{upsample_block_forward.3} parent=39 // pred_check_branch
        %1090 = sbr.rel (%p1088) target = $region44
      $region43: #{upsample_block_forward.3} parent=39 // pred_region
        %s1091 = smul.u32 32, %s21
      $region44: #{upsample_block_forward.3} parent=39 // pred_fallthru
        _
    $region40: #{upsample_block_forward.3} parent=5 // pred_fallthru
      _
    %p1092 = scmp.le.s32.totalorder 2, %s11
    // Predicated region
    $region45: #{upsample_block_forward.3} parent=5 // pred_check
      %p1093 = pneg %p1092
    $region46: #{upsample_block_forward.3} parent=5 // pred_check_branch
      %1095 = sbr.rel (%p1093) target = $region48
    $region47: #{upsample_block_forward.3} parent=5 // pred_region
      %s1096 = ssub.s32 %s11, 2
      // Predicated region
      $region49: #{upsample_block_forward.3} parent=47 // pred_check
        %p1097 = pneg %p166
      $region50: #{upsample_block_forward.3} parent=47 // pred_check_branch
        %1099 = sbr.rel (%p1097) target = $region52
      $region51: #{upsample_block_forward.3} parent=47 // pred_region
        %s1100 = smul.u32 32, %s23
        %p1101 = scmp.lt.s32.totalorder %s22, 1
        %s1102 = scalar_select %p1101, %s22, 1
        %p1103 = scmp.lt.s32.totalorder %s1100, 31
        %s1104 = scalar_select %p1103, %s1100, 31
        %s1105 = smul.addr %s1104, 2
        %s1106 = smul.addr %s1102, 64
        %s1107 = sadd.s32 %s1105, %s1106
        %s1108 = smul.addr %s1107, 8
        %s1109 = scalar_lea.vmem %s5, %s1108
      $region52: #{upsample_block_forward.3} parent=47 // pred_fallthru
        _
    $region48: #{upsample_block_forward.3} parent=5 // pred_fallthru
      _
  $region6: #{upsample_block_forward.3} parent=0 // loop_footer
    %s15 = sadd.s32 1, %s11
  $region7: #{upsample_block_forward.3} parent=0 // loop_footer_branch
    %10 = sbr.rel target = $region3
  $region8: #{upsample_block_forward.3} parent=0 // loop_exit
    _

</llo_original>
